<compile_context>
chip_gen: v6e
topology: v6e:2x2x1
jax: 0.10.0
libtpu: 0.0.40
codegen_flags: <defaults>
</compile_context>

<pallas_src>
import jax
import jax.numpy as jnp
from jax import lax
from jax.experimental import pallas as pl
from jax.experimental.pallas import tpu as pltpu


def lstm_tagger_kernel(x_ref, wih_ref, whh_ref, b_ref, wout_ref, bout_ref,
                       out_ref, gx_ref, hs_ref):
    """Whole forward pass in one invocation (everything resident in VMEM).

    x_ref    : (S, B, E)   embedded tokens
    wih_ref  : (E, 4H)     W_ih^T  (pre-transposed in the wrapper)
    whh_ref  : (H, 4H)     W_hh^T  (pre-transposed in the wrapper)
    b_ref    : (1, 4H)     b_ih + b_hh (pre-summed in the wrapper)
    wout_ref : (H, T)      W_out^T (pre-transposed in the wrapper)
    bout_ref : (1, T)      b_out
    out_ref  : (S, B, T)   softmax tag scores
    gx_ref   : (S, B, 4H)  scratch: input-projected gate pre-activations
    hs_ref   : (S, B, H)   scratch: hidden state of every time step
    """
    S, B, E = x_ref.shape
    H = whh_ref.shape[0]
    T = wout_ref.shape[1]

    # ---- Input projection, hoisted out of the serial recurrence:
    # one (S*B, E) x (E, 4H) MXU matmul; bias added once.
    x_all = x_ref[...].reshape(S * B, E)
    gx = (jnp.dot(x_all, wih_ref[...], preferred_element_type=jnp.float32)
          + b_ref[...])
    gx_ref[...] = gx.reshape(S, B, 4 * H)

    # ---- Serial LSTM recurrence: only h @ W_hh^T + gate math per step.
    w_hh = whh_ref[...]          # hoisted load, reused every step

    def step(t, carry):
        h, c = carry
        gates = gx_ref[t] + jnp.dot(h, w_hh,
                                    preferred_element_type=jnp.float32)  # (B, 4H)
        # PyTorch gate ordering: i, f, g, o.
        # TODO(synk): at this toy H=32 these are sub-vreg lane slices; at real
        # scale pick H as a multiple of 128 (or a per-gate weight layout) so
        # each gate occupies full lane-aligned vregs.
        i = jax.nn.sigmoid(gates[:, 0 * H:1 * H])
        f = jax.nn.sigmoid(gates[:, 1 * H:2 * H])
        g = jnp.tanh(gates[:, 2 * H:3 * H])
        o = jax.nn.sigmoid(gates[:, 3 * H:4 * H])
        c_new = f * c + i * g
        h_new = o * jnp.tanh(c_new)
        hs_ref[t] = h_new
        return (h_new, c_new)

    h0 = jnp.zeros((B, H), jnp.float32)   # init_hidden(): zeros
    c0 = jnp.zeros((B, H), jnp.float32)
    lax.fori_loop(0, S, step, (h0, c0), unroll=True)

    # ---- hidden2tag + softmax, hoisted out of the loop:
    # one (S*B, H) x (H, T) matmul, one softmax, one full-output store.
    hs = hs_ref[...].reshape(S * B, H)
    tag = (jnp.dot(hs, wout_ref[...], preferred_element_type=jnp.float32)
           + bout_ref[...])                                    # (S*B, T)
    tag = tag - jnp.max(tag, axis=-1, keepdims=True)
    e = jnp.exp(tag)
    inv = pl.reciprocal(jnp.sum(e, axis=-1, keepdims=True), approx=True)
    out_ref[...] = (e * inv).reshape(S, B, T).astype(out_ref.dtype)


def lstm_tagger_forward(sentence, params):
    # Embedding lookup (plain-JAX gather glue).
    embeds = params["embedding"][sentence].astype(jnp.float32)   # (S, B, E)
    S, B, E = embeds.shape
    H = params["w_hh"].shape[1]
    T = params["w_out"].shape[0]

    # One-time weight prep (pre-transpose, pre-sum biases) outside the kernel.
    w_ih_t = params["w_ih"].T                           # (E, 4H)
    w_hh_t = params["w_hh"].T                           # (H, 4H)
    w_out_t = params["w_out"].T                         # (H, T)
    b_gates = (params["b_ih"] + params["b_hh"]).reshape(1, 4 * H)
    b_out = params["b_out"].reshape(1, T)
    # TODO(synk): at real scale, cast matmul inputs to bf16 (fp8 on v7x, never
    # int8 there) with f32 accumulation, and split the non-recurrent matmuls
    # over a 'parallel' grid axis to use v7x's second TensorCore.

    out = pl.pallas_call(
        lstm_tagger_kernel,
        out_shape=jax.ShapeDtypeStruct((S, B, T), jnp.float32),
        in_specs=[pl.BlockSpec(memory_space=pltpu.MemorySpace.VMEM)
                  for _ in range(6)],
        out_specs=pl.BlockSpec(memory_space=pltpu.MemorySpace.VMEM),
        scratch_shapes=[
            pltpu.VMEM((S, B, 4 * H), jnp.float32),   # gx: input-projected gates
            pltpu.VMEM((S, B, H), jnp.float32),       # hs: per-step hidden states
        ],
    )(embeds, w_ih_t, w_hh_t, b_gates, w_out_t, b_out)
    return out


def reference_forward(sentence, params):
    """Pure-JAX reference (PyTorch LSTM semantics) for correctness check."""
    embeds = params["embedding"][sentence]        # (S, B, E)
    w_ih, w_hh = params["w_ih"], params["w_hh"]
    b_ih, b_hh = params["b_ih"], params["b_hh"]
    H = w_hh.shape[1]
    B = embeds.shape[1]

    def step(carry, x):
        h, c = carry
        gates = x @ w_ih.T + b_ih + h @ w_hh.T + b_hh
        i = jax.nn.sigmoid(gates[:, :H])
        f = jax.nn.sigmoid(gates[:, H:2 * H])
        g = jnp.tanh(gates[:, 2 * H:3 * H])
        o = jax.nn.sigmoid(gates[:, 3 * H:])
        c = f * c + i * g
        h = o * jnp.tanh(c)
        return (h, c), h

    h0 = jnp.zeros((B, H), jnp.float32)
    (_, _), hs = jax.lax.scan(step, (h0, h0), embeds)
    tag = hs @ params["w_out"].T + params["b_out"]
    return jax.nn.softmax(tag, axis=2)


if __name__ == "__main__":
    EMBEDDING_DIM = 16
    HIDDEN_DIM = 32
    BATCH = 2
    VOCAB = 32
    TAGSET = 8
    SEQ = 8

    key = jax.random.PRNGKey(0)
    ks = jax.random.split(key, 8)
    s = 0.1
    params = {
        "embedding": s * jax.random.normal(ks[0], (VOCAB, EMBEDDING_DIM), jnp.float32),
        "w_ih": s * jax.random.normal(ks[1], (4 * HIDDEN_DIM, EMBEDDING_DIM), jnp.float32),
        "w_hh": s * jax.random.normal(ks[2], (4 * HIDDEN_DIM, HIDDEN_DIM), jnp.float32),
        "b_ih": s * jax.random.normal(ks[3], (4 * HIDDEN_DIM,), jnp.float32),
        "b_hh": s * jax.random.normal(ks[4], (4 * HIDDEN_DIM,), jnp.float32),
        "w_out": s * jax.random.normal(ks[5], (TAGSET, HIDDEN_DIM), jnp.float32),
        "b_out": s * jax.random.normal(ks[6], (TAGSET,), jnp.float32),
    }
    sentence = jax.random.randint(ks[7], (SEQ, BATCH), 0, VOCAB, dtype=jnp.int32)

    out = lstm_tagger_forward(sentence, params)
    out = jax.block_until_ready(out)

    ref = reference_forward(sentence, params)
    assert out.shape == (SEQ, BATCH, TAGSET)
    # Tolerance relaxed slightly vs exact f32 because the softmax denominator
    # uses the approximate EUP reciprocal (pl.reciprocal(approx=True)).
    assert jnp.allclose(out, ref, atol=2e-3, rtol=2e-3), \
        f"max abs err = {float(jnp.max(jnp.abs(out - ref)))}"

    print("KERNEL_OK")
</pallas_src>

<mosaic_0001>
module attributes {stable_mosaic.version = 11 : i64} {
  func.func @lstm_tagger_kernel(%arg0: memref<8x2x16xf32, #tpu.memory_space<vmem>>, %arg1: memref<16x128xf32, #tpu.memory_space<vmem>>, %arg2: memref<32x128xf32, #tpu.memory_space<vmem>>, %arg3: memref<1x128xf32, #tpu.memory_space<vmem>>, %arg4: memref<32x8xf32, #tpu.memory_space<vmem>>, %arg5: memref<1x8xf32, #tpu.memory_space<vmem>>, %arg6: memref<8x2x8xf32, #tpu.memory_space<vmem>>, %arg7: memref<8x2x128xf32, #tpu.memory_space<vmem>>, %arg8: memref<8x2x32xf32, #tpu.memory_space<vmem>>) attributes {dimension_semantics = [], scalar_prefetch = 0 : i64, scratch_operands = 2 : i64, tpu.core_type = #tpu.core_type<tc>} {
    %c0 = arith.constant 0 : index
    %c0_0 = arith.constant 0 : index
    %c0_1 = arith.constant 0 : index
    %0 = vector.load %arg0[%c0, %c0_0, %c0_1] : memref<8x2x16xf32, #tpu.memory_space<vmem>>, vector<8x2x16xf32>
    %1 = vector.shape_cast %0 : vector<8x2x16xf32> to vector<16x16xf32>
    %c0_2 = arith.constant 0 : index
    %c0_3 = arith.constant 0 : index
    %2 = vector.load %arg1[%c0_2, %c0_3] : memref<16x128xf32, #tpu.memory_space<vmem>>, vector<16x128xf32>
    %cst = arith.constant dense<0.000000e+00> : vector<16x128xf32>
    %3 = tpu.matmul %1, %2, %cst {dimension_numbers = #tpu.dot_dimension_numbers<[1], [0], [0], [1], [0, 0, 1, 1], [], []>} : vector<16x16xf32>, vector<16x128xf32>, vector<16x128xf32> -> vector<16x128xf32>
    %c0_4 = arith.constant 0 : index
    %c0_5 = arith.constant 0 : index
    %4 = vector.load %arg3[%c0_4, %c0_5] : memref<1x128xf32, #tpu.memory_space<vmem>>, vector<1x128xf32>
    %5 = vector.broadcast %4 : vector<1x128xf32> to vector<16x128xf32>
    %6 = arith.addf %3, %5 : vector<16x128xf32>
    %7 = vector.shape_cast %6 : vector<16x128xf32> to vector<8x2x128xf32>
    %c0_6 = arith.constant 0 : index
    %c0_7 = arith.constant 0 : index
    %c0_8 = arith.constant 0 : index
    %8 = vector.load %arg7[%c0_6, %c0_7, %c0_8] : memref<8x2x128xf32, #tpu.memory_space<vmem>>, vector<8x2x128xf32>
    tpu.vector_store %arg7[%c0_6, %c0_7, %c0_8], %7 {strides = array<i32>} : memref<8x2x128xf32, #tpu.memory_space<vmem>>, vector<8x2x128xf32>,
    %c0_9 = arith.constant 0 : index
    %c0_10 = arith.constant 0 : index
    %9 = vector.load %arg2[%c0_9, %c0_10] : memref<32x128xf32, #tpu.memory_space<vmem>>, vector<32x128xf32>
    %cst_11 = arith.constant 0.000000e+00 : f32
    %10 = vector.broadcast %cst_11 : f32 to vector<2x32xf32>
    %cst_12 = arith.constant 0.000000e+00 : f32
    %11 = vector.broadcast %cst_12 : f32 to vector<2x32xf32>
    %c0_i32 = arith.constant 0 : i32
    %12 = arith.index_cast %c0_i32 : i32 to index
    %c0_13 = arith.constant 0 : index
    %c0_14 = arith.constant 0 : index
    %13 = vector.load %arg7[%12, %c0_13, %c0_14] : memref<8x2x128xf32, #tpu.memory_space<vmem>>, vector<1x2x128xf32>
    %14 = vector.shape_cast %13 : vector<1x2x128xf32> to vector<2x128xf32>
    %cst_15 = arith.constant dense<0.000000e+00> : vector<2x128xf32>
    %15 = tpu.matmul %10, %9, %cst_15 {dimension_numbers = #tpu.dot_dimension_numbers<[1], [0], [0], [1], [0, 0, 1, 1], [], []>} : vector<2x32xf32>, vector<32x128xf32>, vector<2x128xf32> -> vector<2x128xf32>
    %16 = arith.addf %14, %15 : vector<2x128xf32>
    %17 = vector.extract_strided_slice %16 {offsets = [0, 0], sizes = [2, 32], strides = [1, 1]} : vector<2x128xf32> to vector<2x32xf32>
    %18 = arith.negf %17 : vector<2x32xf32>
    %19 = math.exp %18 : vector<2x32xf32>
    %cst_16 = arith.constant 1.000000e+00 : f32
    %20 = vector.broadcast %cst_16 : f32 to vector<2x32xf32>
    %21 = arith.addf %20, %19 : vector<2x32xf32>
    %22 = arith.divf %20, %21 : vector<2x32xf32>
    %23 = vector.extract_strided_slice %16 {offsets = [0, 32], sizes = [2, 32], strides = [1, 1]} : vector<2x128xf32> to vector<2x32xf32>
    %24 = arith.negf %23 : vector<2x32xf32>
    %25 = math.exp %24 : vector<2x32xf32>
    %cst_17 = arith.constant 1.000000e+00 : f32
    %26 = vector.broadcast %cst_17 : f32 to vector<2x32xf32>
    %27 = arith.addf %26, %25 : vector<2x32xf32>
    %28 = arith.divf %26, %27 : vector<2x32xf32>
    %29 = vector.extract_strided_slice %16 {offsets = [0, 64], sizes = [2, 32], strides = [1, 1]} : vector<2x128xf32> to vector<2x32xf32>
    %30 = math.tanh %29 : vector<2x32xf32>
    %31 = vector.extract_strided_slice %16 {offsets = [0, 96], sizes = [2, 32], strides = [1, 1]} : vector<2x128xf32> to vector<2x32xf32>
    %32 = arith.negf %31 : vector<2x32xf32>
    %33 = math.exp %32 : vector<2x32xf32>
    %cst_18 = arith.constant 1.000000e+00 : f32
    %34 = vector.broadcast %cst_18 : f32 to vector<2x32xf32>
    %35 = arith.addf %34, %33 : vector<2x32xf32>
    %36 = arith.divf %34, %35 : vector<2x32xf32>
    %37 = arith.mulf %28, %11 : vector<2x32xf32>
    %38 = arith.mulf %22, %30 : vector<2x32xf32>
    %39 = arith.addf %37, %38 : vector<2x32xf32>
    %40 = math.tanh %39 : vector<2x32xf32>
    %41 = arith.mulf %36, %40 : vector<2x32xf32>
    %42 = arith.index_cast %c0_i32 : i32 to index
    %c0_19 = arith.constant 0 : index
    %c0_20 = arith.constant 0 : index
    %43 = vector.load %arg8[%42, %c0_19, %c0_20] : memref<8x2x32xf32, #tpu.memory_space<vmem>>, vector<1x2x32xf32>
    %44 = vector.shape_cast %43 : vector<1x2x32xf32> to vector<2x32xf32>
    %45 = vector.shape_cast %41 : vector<2x32xf32> to vector<1x2x32xf32>
    tpu.vector_store %arg8[%42, %c0_19, %c0_20], %45 {strides = array<i32>} : memref<8x2x32xf32, #tpu.memory_space<vmem>>, vector<1x2x32xf32>,
    %c1_i32 = arith.constant 1 : i32
    %46 = arith.index_cast %c1_i32 : i32 to index
    %c0_21 = arith.constant 0 : index
    %c0_22 = arith.constant 0 : index
    %47 = vector.load %arg7[%46, %c0_21, %c0_22] : memref<8x2x128xf32, #tpu.memory_space<vmem>>, vector<1x2x128xf32>
    %48 = vector.shape_cast %47 : vector<1x2x128xf32> to vector<2x128xf32>
    %cst_23 = arith.constant dense<0.000000e+00> : vector<2x128xf32>
    %49 = tpu.matmul %41, %9, %cst_23 {dimension_numbers = #tpu.dot_dimension_numbers<[1], [0], [0], [1], [0, 0, 1, 1], [], []>} : vector<2x32xf32>, vector<32x128xf32>, vector<2x128xf32> -> vector<2x128xf32>
    %50 = arith.addf %48, %49 : vector<2x128xf32>
    %51 = vector.extract_strided_slice %50 {offsets = [0, 0], sizes = [2, 32], strides = [1, 1]} : vector<2x128xf32> to vector<2x32xf32>
    %52 = arith.negf %51 : vector<2x32xf32>
    %53 = math.exp %52 : vector<2x32xf32>
    %cst_24 = arith.constant 1.000000e+00 : f32
    %54 = vector.broadcast %cst_24 : f32 to vector<2x32xf32>
    %55 = arith.addf %54, %53 : vector<2x32xf32>
    %56 = arith.divf %54, %55 : vector<2x32xf32>
    %57 = vector.extract_strided_slice %50 {offsets = [0, 32], sizes = [2, 32], strides = [1, 1]} : vector<2x128xf32> to vector<2x32xf32>
    %58 = arith.negf %57 : vector<2x32xf32>
    %59 = math.exp %58 : vector<2x32xf32>
    %cst_25 = arith.constant 1.000000e+00 : f32
    %60 = vector.broadcast %cst_25 : f32 to vector<2x32xf32>
    %61 = arith.addf %60, %59 : vector<2x32xf32>
    %62 = arith.divf %60, %61 : vector<2x32xf32>
    %63 = vector.extract_strided_slice %50 {offsets = [0, 64], sizes = [2, 32], strides = [1, 1]} : vector<2x128xf32> to vector<2x32xf32>
    %64 = math.tanh %63 : vector<2x32xf32>
    %65 = vector.extract_strided_slice %50 {offsets = [0, 96], sizes = [2, 32], strides = [1, 1]} : vector<2x128xf32> to vector<2x32xf32>
    %66 = arith.negf %65 : vector<2x32xf32>
    %67 = math.exp %66 : vector<2x32xf32>
    %cst_26 = arith.constant 1.000000e+00 : f32
    %68 = vector.broadcast %cst_26 : f32 to vector<2x32xf32>
    %69 = arith.addf %68, %67 : vector<2x32xf32>
    %70 = arith.divf %68, %69 : vector<2x32xf32>
    %71 = arith.mulf %62, %39 : vector<2x32xf32>
    %72 = arith.mulf %56, %64 : vector<2x32xf32>
    %73 = arith.addf %71, %72 : vector<2x32xf32>
    %74 = math.tanh %73 : vector<2x32xf32>
    %75 = arith.mulf %70, %74 : vector<2x32xf32>
    %76 = arith.index_cast %c1_i32 : i32 to index
    %c0_27 = arith.constant 0 : index
    %c0_28 = arith.constant 0 : index
    %77 = vector.load %arg8[%76, %c0_27, %c0_28] : memref<8x2x32xf32, #tpu.memory_space<vmem>>, vector<1x2x32xf32>
    %78 = vector.shape_cast %77 : vector<1x2x32xf32> to vector<2x32xf32>
    %79 = vector.shape_cast %75 : vector<2x32xf32> to vector<1x2x32xf32>
    tpu.vector_store %arg8[%76, %c0_27, %c0_28], %79 {strides = array<i32>} : memref<8x2x32xf32, #tpu.memory_space<vmem>>, vector<1x2x32xf32>,
    %c2_i32 = arith.constant 2 : i32
    %80 = arith.index_cast %c2_i32 : i32 to index
    %c0_29 = arith.constant 0 : index
    %c0_30 = arith.constant 0 : index
    %81 = vector.load %arg7[%80, %c0_29, %c0_30] : memref<8x2x128xf32, #tpu.memory_space<vmem>>, vector<1x2x128xf32>
    %82 = vector.shape_cast %81 : vector<1x2x128xf32> to vector<2x128xf32>
    %cst_31 = arith.constant dense<0.000000e+00> : vector<2x128xf32>
    %83 = tpu.matmul %75, %9, %cst_31 {dimension_numbers = #tpu.dot_dimension_numbers<[1], [0], [0], [1], [0, 0, 1, 1], [], []>} : vector<2x32xf32>, vector<32x128xf32>, vector<2x128xf32> -> vector<2x128xf32>
    %84 = arith.addf %82, %83 : vector<2x128xf32>
    %85 = vector.extract_strided_slice %84 {offsets = [0, 0], sizes = [2, 32], strides = [1, 1]} : vector<2x128xf32> to vector<2x32xf32>
    %86 = arith.negf %85 : vector<2x32xf32>
    %87 = math.exp %86 : vector<2x32xf32>
    %cst_32 = arith.constant 1.000000e+00 : f32
    %88 = vector.broadcast %cst_32 : f32 to vector<2x32xf32>
    %89 = arith.addf %88, %87 : vector<2x32xf32>
    %90 = arith.divf %88, %89 : vector<2x32xf32>
    %91 = vector.extract_strided_slice %84 {offsets = [0, 32], sizes = [2, 32], strides = [1, 1]} : vector<2x128xf32> to vector<2x32xf32>
    %92 = arith.negf %91 : vector<2x32xf32>
    %93 = math.exp %92 : vector<2x32xf32>
    %cst_33 = arith.constant 1.000000e+00 : f32
    %94 = vector.broadcast %cst_33 : f32 to vector<2x32xf32>
    %95 = arith.addf %94, %93 : vector<2x32xf32>
    %96 = arith.divf %94, %95 : vector<2x32xf32>
    %97 = vector.extract_strided_slice %84 {offsets = [0, 64], sizes = [2, 32], strides = [1, 1]} : vector<2x128xf32> to vector<2x32xf32>
    %98 = math.tanh %97 : vector<2x32xf32>
    %99 = vector.extract_strided_slice %84 {offsets = [0, 96], sizes = [2, 32], strides = [1, 1]} : vector<2x128xf32> to vector<2x32xf32>
    %100 = arith.negf %99 : vector<2x32xf32>
    %101 = math.exp %100 : vector<2x32xf32>
    %cst_34 = arith.constant 1.000000e+00 : f32
    %102 = vector.broadcast %cst_34 : f32 to vector<2x32xf32>
    %103 = arith.addf %102, %101 : vector<2x32xf32>
    %104 = arith.divf %102, %103 : vector<2x32xf32>
    %105 = arith.mulf %96, %73 : vector<2x32xf32>
    %106 = arith.mulf %90, %98 : vector<2x32xf32>
    %107 = arith.addf %105, %106 : vector<2x32xf32>
    %108 = math.tanh %107 : vector<2x32xf32>
    %109 = arith.mulf %104, %108 : vector<2x32xf32>
    %110 = arith.index_cast %c2_i32 : i32 to index
    %c0_35 = arith.constant 0 : index
    %c0_36 = arith.constant 0 : index
    %111 = vector.load %arg8[%110, %c0_35, %c0_36] : memref<8x2x32xf32, #tpu.memory_space<vmem>>, vector<1x2x32xf32>
    %112 = vector.shape_cast %111 : vector<1x2x32xf32> to vector<2x32xf32>
    %113 = vector.shape_cast %109 : vector<2x32xf32> to vector<1x2x32xf32>
    tpu.vector_store %arg8[%110, %c0_35, %c0_36], %113 {strides = array<i32>} : memref<8x2x32xf32, #tpu.memory_space<vmem>>, vector<1x2x32xf32>,
    %c3_i32 = arith.constant 3 : i32
    %114 = arith.index_cast %c3_i32 : i32 to index
    %c0_37 = arith.constant 0 : index
    %c0_38 = arith.constant 0 : index
    %115 = vector.load %arg7[%114, %c0_37, %c0_38] : memref<8x2x128xf32, #tpu.memory_space<vmem>>, vector<1x2x128xf32>
    %116 = vector.shape_cast %115 : vector<1x2x128xf32> to vector<2x128xf32>
    %cst_39 = arith.constant dense<0.000000e+00> : vector<2x128xf32>
    %117 = tpu.matmul %109, %9, %cst_39 {dimension_numbers = #tpu.dot_dimension_numbers<[1], [0], [0], [1], [0, 0, 1, 1], [], []>} : vector<2x32xf32>, vector<32x128xf32>, vector<2x128xf32> -> vector<2x128xf32>
    %118 = arith.addf %116, %117 : vector<2x128xf32>
    %119 = vector.extract_strided_slice %118 {offsets = [0, 0], sizes = [2, 32], strides = [1, 1]} : vector<2x128xf32> to vector<2x32xf32>
    %120 = arith.negf %119 : vector<2x32xf32>
    %121 = math.exp %120 : vector<2x32xf32>
    %cst_40 = arith.constant 1.000000e+00 : f32
    %122 = vector.broadcast %cst_40 : f32 to vector<2x32xf32>
    %123 = arith.addf %122, %121 : vector<2x32xf32>
    %124 = arith.divf %122, %123 : vector<2x32xf32>
    %125 = vector.extract_strided_slice %118 {offsets = [0, 32], sizes = [2, 32], strides = [1, 1]} : vector<2x128xf32> to vector<2x32xf32>
    %126 = arith.negf %125 : vector<2x32xf32>
    %127 = math.exp %126 : vector<2x32xf32>
    %cst_41 = arith.constant 1.000000e+00 : f32
    %128 = vector.broadcast %cst_41 : f32 to vector<2x32xf32>
    %129 = arith.addf %128, %127 : vector<2x32xf32>
    %130 = arith.divf %128, %129 : vector<2x32xf32>
    %131 = vector.extract_strided_slice %118 {offsets = [0, 64], sizes = [2, 32], strides = [1, 1]} : vector<2x128xf32> to vector<2x32xf32>
    %132 = math.tanh %131 : vector<2x32xf32>
    %133 = vector.extract_strided_slice %118 {offsets = [0, 96], sizes = [2, 32], strides = [1, 1]} : vector<2x128xf32> to vector<2x32xf32>
    %134 = arith.negf %133 : vector<2x32xf32>
    %135 = math.exp %134 : vector<2x32xf32>
    %cst_42 = arith.constant 1.000000e+00 : f32
    %136 = vector.broadcast %cst_42 : f32 to vector<2x32xf32>
    %137 = arith.addf %136, %135 : vector<2x32xf32>
    %138 = arith.divf %136, %137 : vector<2x32xf32>
    %139 = arith.mulf %130, %107 : vector<2x32xf32>
    %140 = arith.mulf %124, %132 : vector<2x32xf32>
    %141 = arith.addf %139, %140 : vector<2x32xf32>
    %142 = math.tanh %141 : vector<2x32xf32>
    %143 = arith.mulf %138, %142 : vector<2x32xf32>
    %144 = arith.index_cast %c3_i32 : i32 to index
    %c0_43 = arith.constant 0 : index
    %c0_44 = arith.constant 0 : index
    %145 = vector.load %arg8[%144, %c0_43, %c0_44] : memref<8x2x32xf32, #tpu.memory_space<vmem>>, vector<1x2x32xf32>
    %146 = vector.shape_cast %145 : vector<1x2x32xf32> to vector<2x32xf32>
    %147 = vector.shape_cast %143 : vector<2x32xf32> to vector<1x2x32xf32>
    tpu.vector_store %arg8[%144, %c0_43, %c0_44], %147 {strides = array<i32>} : memref<8x2x32xf32, #tpu.memory_space<vmem>>, vector<1x2x32xf32>,
    %c4_i32 = arith.constant 4 : i32
    %148 = arith.index_cast %c4_i32 : i32 to index
    %c0_45 = arith.constant 0 : index
    %c0_46 = arith.constant 0 : index
    %149 = vector.load %arg7[%148, %c0_45, %c0_46] : memref<8x2x128xf32, #tpu.memory_space<vmem>>, vector<1x2x128xf32>
    %150 = vector.shape_cast %149 : vector<1x2x128xf32> to vector<2x128xf32>
    %cst_47 = arith.constant dense<0.000000e+00> : vector<2x128xf32>
    %151 = tpu.matmul %143, %9, %cst_47 {dimension_numbers = #tpu.dot_dimension_numbers<[1], [0], [0], [1], [0, 0, 1, 1], [], []>} : vector<2x32xf32>, vector<32x128xf32>, vector<2x128xf32> -> vector<2x128xf32>
    %152 = arith.addf %150, %151 : vector<2x128xf32>
    %153 = vector.extract_strided_slice %152 {offsets = [0, 0], sizes = [2, 32], strides = [1, 1]} : vector<2x128xf32> to vector<2x32xf32>
    %154 = arith.negf %153 : vector<2x32xf32>
    %155 = math.exp %154 : vector<2x32xf32>
    %cst_48 = arith.constant 1.000000e+00 : f32
    %156 = vector.broadcast %cst_48 : f32 to vector<2x32xf32>
    %157 = arith.addf %156, %155 : vector<2x32xf32>
    %158 = arith.divf %156, %157 : vector<2x32xf32>
    %159 = vector.extract_strided_slice %152 {offsets = [0, 32], sizes = [2, 32], strides = [1, 1]} : vector<2x128xf32> to vector<2x32xf32>
    %160 = arith.negf %159 : vector<2x32xf32>
    %161 = math.exp %160 : vector<2x32xf32>
    %cst_49 = arith.constant 1.000000e+00 : f32
    %162 = vector.broadcast %cst_49 : f32 to vector<2x32xf32>
    %163 = arith.addf %162, %161 : vector<2x32xf32>
    %164 = arith.divf %162, %163 : vector<2x32xf32>
    %165 = vector.extract_strided_slice %152 {offsets = [0, 64], sizes = [2, 32], strides = [1, 1]} : vector<2x128xf32> to vector<2x32xf32>
    %166 = math.tanh %165 : vector<2x32xf32>
    %167 = vector.extract_strided_slice %152 {offsets = [0, 96], sizes = [2, 32], strides = [1, 1]} : vector<2x128xf32> to vector<2x32xf32>
    %168 = arith.negf %167 : vector<2x32xf32>
    %169 = math.exp %168 : vector<2x32xf32>
    %cst_50 = arith.constant 1.000000e+00 : f32
    %170 = vector.broadcast %cst_50 : f32 to vector<2x32xf32>
    %171 = arith.addf %170, %169 : vector<2x32xf32>
    %172 = arith.divf %170, %171 : vector<2x32xf32>
    %173 = arith.mulf %164, %141 : vector<2x32xf32>
    %174 = arith.mulf %158, %166 : vector<2x32xf32>
    %175 = arith.addf %173, %174 : vector<2x32xf32>
    %176 = math.tanh %175 : vector<2x32xf32>
    %177 = arith.mulf %172, %176 : vector<2x32xf32>
    %178 = arith.index_cast %c4_i32 : i32 to index
    %c0_51 = arith.constant 0 : index
    %c0_52 = arith.constant 0 : index
    %179 = vector.load %arg8[%178, %c0_51, %c0_52] : memref<8x2x32xf32, #tpu.memory_space<vmem>>, vector<1x2x32xf32>
    %180 = vector.shape_cast %179 : vector<1x2x32xf32> to vector<2x32xf32>
    %181 = vector.shape_cast %177 : vector<2x32xf32> to vector<1x2x32xf32>
    tpu.vector_store %arg8[%178, %c0_51, %c0_52], %181 {strides = array<i32>} : memref<8x2x32xf32, #tpu.memory_space<vmem>>, vector<1x2x32xf32>,
    %c5_i32 = arith.constant 5 : i32
    %182 = arith.index_cast %c5_i32 : i32 to index
    %c0_53 = arith.constant 0 : index
    %c0_54 = arith.constant 0 : index
    %183 = vector.load %arg7[%182, %c0_53, %c0_54] : memref<8x2x128xf32, #tpu.memory_space<vmem>>, vector<1x2x128xf32>
    %184 = vector.shape_cast %183 : vector<1x2x128xf32> to vector<2x128xf32>
    %cst_55 = arith.constant dense<0.000000e+00> : vector<2x128xf32>
    %185 = tpu.matmul %177, %9, %cst_55 {dimension_numbers = #tpu.dot_dimension_numbers<[1], [0], [0], [1], [0, 0, 1, 1], [], []>} : vector<2x32xf32>, vector<32x128xf32>, vector<2x128xf32> -> vector<2x128xf32>
    %186 = arith.addf %184, %185 : vector<2x128xf32>
    %187 = vector.extract_strided_slice %186 {offsets = [0, 0], sizes = [2, 32], strides = [1, 1]} : vector<2x128xf32> to vector<2x32xf32>
    %188 = arith.negf %187 : vector<2x32xf32>
    %189 = math.exp %188 : vector<2x32xf32>
    %cst_56 = arith.constant 1.000000e+00 : f32
    %190 = vector.broadcast %cst_56 : f32 to vector<2x32xf32>
    %191 = arith.addf %190, %189 : vector<2x32xf32>
    %192 = arith.divf %190, %191 : vector<2x32xf32>
    %193 = vector.extract_strided_slice %186 {offsets = [0, 32], sizes = [2, 32], strides = [1, 1]} : vector<2x128xf32> to vector<2x32xf32>
    %194 = arith.negf %193 : vector<2x32xf32>
    %195 = math.exp %194 : vector<2x32xf32>
    %cst_57 = arith.constant 1.000000e+00 : f32
    %196 = vector.broadcast %cst_57 : f32 to vector<2x32xf32>
    %197 = arith.addf %196, %195 : vector<2x32xf32>
    %198 = arith.divf %196, %197 : vector<2x32xf32>
    %199 = vector.extract_strided_slice %186 {offsets = [0, 64], sizes = [2, 32], strides = [1, 1]} : vector<2x128xf32> to vector<2x32xf32>
    %200 = math.tanh %199 : vector<2x32xf32>
    %201 = vector.extract_strided_slice %186 {offsets = [0, 96], sizes = [2, 32], strides = [1, 1]} : vector<2x128xf32> to vector<2x32xf32>
    %202 = arith.negf %201 : vector<2x32xf32>
    %203 = math.exp %202 : vector<2x32xf32>
    %cst_58 = arith.constant 1.000000e+00 : f32
    %204 = vector.broadcast %cst_58 : f32 to vector<2x32xf32>
    %205 = arith.addf %204, %203 : vector<2x32xf32>
    %206 = arith.divf %204, %205 : vector<2x32xf32>
    %207 = arith.mulf %198, %175 : vector<2x32xf32>
    %208 = arith.mulf %192, %200 : vector<2x32xf32>
    %209 = arith.addf %207, %208 : vector<2x32xf32>
    %210 = math.tanh %209 : vector<2x32xf32>
    %211 = arith.mulf %206, %210 : vector<2x32xf32>
    %212 = arith.index_cast %c5_i32 : i32 to index
    %c0_59 = arith.constant 0 : index
    %c0_60 = arith.constant 0 : index
    %213 = vector.load %arg8[%212, %c0_59, %c0_60] : memref<8x2x32xf32, #tpu.memory_space<vmem>>, vector<1x2x32xf32>
    %214 = vector.shape_cast %213 : vector<1x2x32xf32> to vector<2x32xf32>
    %215 = vector.shape_cast %211 : vector<2x32xf32> to vector<1x2x32xf32>
    tpu.vector_store %arg8[%212, %c0_59, %c0_60], %215 {strides = array<i32>} : memref<8x2x32xf32, #tpu.memory_space<vmem>>, vector<1x2x32xf32>,
    %c6_i32 = arith.constant 6 : i32
    %216 = arith.index_cast %c6_i32 : i32 to index
    %c0_61 = arith.constant 0 : index
    %c0_62 = arith.constant 0 : index
    %217 = vector.load %arg7[%216, %c0_61, %c0_62] : memref<8x2x128xf32, #tpu.memory_space<vmem>>, vector<1x2x128xf32>
    %218 = vector.shape_cast %217 : vector<1x2x128xf32> to vector<2x128xf32>
    %cst_63 = arith.constant dense<0.000000e+00> : vector<2x128xf32>
    %219 = tpu.matmul %211, %9, %cst_63 {dimension_numbers = #tpu.dot_dimension_numbers<[1], [0], [0], [1], [0, 0, 1, 1], [], []>} : vector<2x32xf32>, vector<32x128xf32>, vector<2x128xf32> -> vector<2x128xf32>
    %220 = arith.addf %218, %219 : vector<2x128xf32>
    %221 = vector.extract_strided_slice %220 {offsets = [0, 0], sizes = [2, 32], strides = [1, 1]} : vector<2x128xf32> to vector<2x32xf32>
    %222 = arith.negf %221 : vector<2x32xf32>
    %223 = math.exp %222 : vector<2x32xf32>
    %cst_64 = arith.constant 1.000000e+00 : f32
    %224 = vector.broadcast %cst_64 : f32 to vector<2x32xf32>
    %225 = arith.addf %224, %223 : vector<2x32xf32>
    %226 = arith.divf %224, %225 : vector<2x32xf32>
    %227 = vector.extract_strided_slice %220 {offsets = [0, 32], sizes = [2, 32], strides = [1, 1]} : vector<2x128xf32> to vector<2x32xf32>
    %228 = arith.negf %227 : vector<2x32xf32>
    %229 = math.exp %228 : vector<2x32xf32>
    %cst_65 = arith.constant 1.000000e+00 : f32
    %230 = vector.broadcast %cst_65 : f32 to vector<2x32xf32>
    %231 = arith.addf %230, %229 : vector<2x32xf32>
    %232 = arith.divf %230, %231 : vector<2x32xf32>
    %233 = vector.extract_strided_slice %220 {offsets = [0, 64], sizes = [2, 32], strides = [1, 1]} : vector<2x128xf32> to vector<2x32xf32>
    %234 = math.tanh %233 : vector<2x32xf32>
    %235 = vector.extract_strided_slice %220 {offsets = [0, 96], sizes = [2, 32], strides = [1, 1]} : vector<2x128xf32> to vector<2x32xf32>
    %236 = arith.negf %235 : vector<2x32xf32>
    %237 = math.exp %236 : vector<2x32xf32>
    %cst_66 = arith.constant 1.000000e+00 : f32
    %238 = vector.broadcast %cst_66 : f32 to vector<2x32xf32>
    %239 = arith.addf %238, %237 : vector<2x32xf32>
    %240 = arith.divf %238, %239 : vector<2x32xf32>
    %241 = arith.mulf %232, %209 : vector<2x32xf32>
    %242 = arith.mulf %226, %234 : vector<2x32xf32>
    %243 = arith.addf %241, %242 : vector<2x32xf32>
    %244 = math.tanh %243 : vector<2x32xf32>
    %245 = arith.mulf %240, %244 : vector<2x32xf32>
    %246 = arith.index_cast %c6_i32 : i32 to index
    %c0_67 = arith.constant 0 : index
    %c0_68 = arith.constant 0 : index
    %247 = vector.load %arg8[%246, %c0_67, %c0_68] : memref<8x2x32xf32, #tpu.memory_space<vmem>>, vector<1x2x32xf32>
    %248 = vector.shape_cast %247 : vector<1x2x32xf32> to vector<2x32xf32>
    %249 = vector.shape_cast %245 : vector<2x32xf32> to vector<1x2x32xf32>
    tpu.vector_store %arg8[%246, %c0_67, %c0_68], %249 {strides = array<i32>} : memref<8x2x32xf32, #tpu.memory_space<vmem>>, vector<1x2x32xf32>,
    %c7_i32 = arith.constant 7 : i32
    %250 = arith.index_cast %c7_i32 : i32 to index
    %c0_69 = arith.constant 0 : index
    %c0_70 = arith.constant 0 : index
    %251 = vector.load %arg7[%250, %c0_69, %c0_70] : memref<8x2x128xf32, #tpu.memory_space<vmem>>, vector<1x2x128xf32>
    %252 = vector.shape_cast %251 : vector<1x2x128xf32> to vector<2x128xf32>
    %cst_71 = arith.constant dense<0.000000e+00> : vector<2x128xf32>
    %253 = tpu.matmul %245, %9, %cst_71 {dimension_numbers = #tpu.dot_dimension_numbers<[1], [0], [0], [1], [0, 0, 1, 1], [], []>} : vector<2x32xf32>, vector<32x128xf32>, vector<2x128xf32> -> vector<2x128xf32>
    %254 = arith.addf %252, %253 : vector<2x128xf32>
    %255 = vector.extract_strided_slice %254 {offsets = [0, 0], sizes = [2, 32], strides = [1, 1]} : vector<2x128xf32> to vector<2x32xf32>
    %256 = arith.negf %255 : vector<2x32xf32>
    %257 = math.exp %256 : vector<2x32xf32>
    %cst_72 = arith.constant 1.000000e+00 : f32
    %258 = vector.broadcast %cst_72 : f32 to vector<2x32xf32>
    %259 = arith.addf %258, %257 : vector<2x32xf32>
    %260 = arith.divf %258, %259 : vector<2x32xf32>
    %261 = vector.extract_strided_slice %254 {offsets = [0, 32], sizes = [2, 32], strides = [1, 1]} : vector<2x128xf32> to vector<2x32xf32>
    %262 = arith.negf %261 : vector<2x32xf32>
    %263 = math.exp %262 : vector<2x32xf32>
    %cst_73 = arith.constant 1.000000e+00 : f32
    %264 = vector.broadcast %cst_73 : f32 to vector<2x32xf32>
    %265 = arith.addf %264, %263 : vector<2x32xf32>
    %266 = arith.divf %264, %265 : vector<2x32xf32>
    %267 = vector.extract_strided_slice %254 {offsets = [0, 64], sizes = [2, 32], strides = [1, 1]} : vector<2x128xf32> to vector<2x32xf32>
    %268 = math.tanh %267 : vector<2x32xf32>
    %269 = vector.extract_strided_slice %254 {offsets = [0, 96], sizes = [2, 32], strides = [1, 1]} : vector<2x128xf32> to vector<2x32xf32>
    %270 = arith.negf %269 : vector<2x32xf32>
    %271 = math.exp %270 : vector<2x32xf32>
    %cst_74 = arith.constant 1.000000e+00 : f32
    %272 = vector.broadcast %cst_74 : f32 to vector<2x32xf32>
    %273 = arith.addf %272, %271 : vector<2x32xf32>
    %274 = arith.divf %272, %273 : vector<2x32xf32>
    %275 = arith.mulf %266, %243 : vector<2x32xf32>
    %276 = arith.mulf %260, %268 : vector<2x32xf32>
    %277 = arith.addf %275, %276 : vector<2x32xf32>
    %278 = math.tanh %277 : vector<2x32xf32>
    %279 = arith.mulf %274, %278 : vector<2x32xf32>
    %280 = arith.index_cast %c7_i32 : i32 to index
    %c0_75 = arith.constant 0 : index
    %c0_76 = arith.constant 0 : index
    %281 = vector.load %arg8[%280, %c0_75, %c0_76] : memref<8x2x32xf32, #tpu.memory_space<vmem>>, vector<1x2x32xf32>
    %282 = vector.shape_cast %281 : vector<1x2x32xf32> to vector<2x32xf32>
    %283 = vector.shape_cast %279 : vector<2x32xf32> to vector<1x2x32xf32>
    tpu.vector_store %arg8[%280, %c0_75, %c0_76], %283 {strides = array<i32>} : memref<8x2x32xf32, #tpu.memory_space<vmem>>, vector<1x2x32xf32>,
    %c8_i32 = arith.constant 8 : i32
    %c0_77 = arith.constant 0 : index
    %c0_78 = arith.constant 0 : index
    %c0_79 = arith.constant 0 : index
    %284 = vector.load %arg8[%c0_77, %c0_78, %c0_79] : memref<8x2x32xf32, #tpu.memory_space<vmem>>, vector<8x2x32xf32>
    %285 = vector.shape_cast %284 : vector<8x2x32xf32> to vector<16x32xf32>
    %c0_80 = arith.constant 0 : index
    %c0_81 = arith.constant 0 : index
    %286 = vector.load %arg4[%c0_80, %c0_81] : memref<32x8xf32, #tpu.memory_space<vmem>>, vector<32x8xf32>
    %cst_82 = arith.constant dense<0.000000e+00> : vector<16x8xf32>
    %287 = tpu.matmul %285, %286, %cst_82 {dimension_numbers = #tpu.dot_dimension_numbers<[1], [0], [0], [1], [0, 0, 1, 1], [], []>} : vector<16x32xf32>, vector<32x8xf32>, vector<16x8xf32> -> vector<16x8xf32>
    %c0_83 = arith.constant 0 : index
    %c0_84 = arith.constant 0 : index
    %288 = vector.load %arg5[%c0_83, %c0_84] : memref<1x8xf32, #tpu.memory_space<vmem>>, vector<1x8xf32>
    %289 = vector.broadcast %288 : vector<1x8xf32> to vector<16x8xf32>
    %290 = arith.addf %287, %289 : vector<16x8xf32>
    %cst_85 = arith.constant dense<0xFF800000> : vector<16xf32>
    %291 = vector.multi_reduction <maximumf>, %290, %cst_85 [1] : vector<16x8xf32> to vector<16xf32>
    %292 = vector.shape_cast %291 : vector<16xf32> to vector<16x1xf32>
    %293 = vector.broadcast %292 : vector<16x1xf32> to vector<16x8xf32>
    %294 = arith.subf %290, %293 : vector<16x8xf32>
    %295 = math.exp %294 : vector<16x8xf32>
    %cst_86 = arith.constant dense<0.000000e+00> : vector<16xf32>
    %296 = vector.multi_reduction <add>, %295, %cst_86 [1] : vector<16x8xf32> to vector<16xf32>
    %297 = vector.shape_cast %296 : vector<16xf32> to vector<16x1xf32>
    %298 = tpu.reciprocal %297 {approx = true} : vector<16x1xf32> -> vector<16x1xf32>
    %299 = vector.broadcast %298 : vector<16x1xf32> to vector<16x8xf32>
    %300 = arith.mulf %295, %299 : vector<16x8xf32>
    %301 = vector.shape_cast %300 : vector<16x8xf32> to vector<8x2x8xf32>
    %c0_87 = arith.constant 0 : index
    %c0_88 = arith.constant 0 : index
    %c0_89 = arith.constant 0 : index
    %302 = vector.load %arg6[%c0_87, %c0_88, %c0_89] : memref<8x2x8xf32, #tpu.memory_space<vmem>>, vector<8x2x8xf32>
    tpu.vector_store %arg6[%c0_87, %c0_88, %c0_89], %301 {strides = array<i32>} : memref<8x2x8xf32, #tpu.memory_space<vmem>>, vector<8x2x8xf32>,
    return
  }
}

</mosaic_0001>

<llo_original>
// kernel: tpu_custom_call.1
$region0: #{tpu_custom_call.1}
  #allocation0 [shape = 'u32[]', space=smem, size = 0x4, offset = 0x4, fixed_abs, tag = 'smem constant byte address 0x4 - core index']
  #allocation1 [shape = 'u32[144,128]{1,0:T(1,128)}', space=vmem, size = 0x12000, scoped, tag = 'internal scratch']
  #allocation2 [shape = 'f32[8,2,128]{2,1,0:T(2,128)}', space=vmem, size = 0x2000, scoped, tag = 'scratch operand']
  #allocation3 [shape = 'f32[8,2,32]{2,1,0:T(2,128)}', space=vmem, size = 0x2000, scoped, tag = 'scratch operand']
  %s0 = inlined_call_operand.hbm [shape: f32[8,2,16], index: 0, kind: input, shape index: {}]
  %s1 = inlined_call_operand.hbm [shape: f32[16,128], index: 1, kind: input, shape index: {}]
  %s2 = inlined_call_operand.vmem [shape: f32[32,128], index: 2, kind: input, shape index: {}]
  %s3 = inlined_call_operand.vmem [shape: f32[1,128], index: 3, kind: input, shape index: {}]
  %s4 = inlined_call_operand.vmem [shape: f32[32,8], index: 4, kind: input, shape index: {}]
  %s5 = inlined_call_operand.vmem [shape: f32[1,8], index: 5, kind: input, shape index: {}]
  %s6 = inlined_call_operand.hbm [shape: f32[8,2,8], index: 6, kind: output, shape index: {}]
  %s7 = sld [smem:[#allocation0]]
  $region42: #{tpu_custom_call.1} parent=0
    _
  %s9 = ssub.s32 1, %s7
  %s10 = scalar_select 0, %s9, %s7
  $region1: #{tpu_custom_call.1} parent=0
    #allocation4 [shape = 'u8[8192]{0}', space=vmem, size = 0x2000, scoped, tag = 'input window, operand 0, single buffered']
    #allocation5 [shape = 's32[1]{0}', space=sflag, size = 0x4, scoped, tag = 'scoped memory for tpu_custom_call.1']
    #allocation6 [shape = 's32[1]{0}', space=sflag, size = 0x4, scoped, tag = 'scoped memory for tpu_custom_call.1']
    #allocation7 [shape = 'u8[8192]{0}', space=vmem, size = 0x2000, scoped, tag = 'input window, operand 1, single buffered']
    #allocation8 [shape = 's32[1]{0}', space=sflag, size = 0x4, scoped, tag = 'scoped memory for tpu_custom_call.1']
    #allocation9 [shape = 'u8[8192]{0}', space=vmem, size = 0x2000, scoped, tag = 'output window, operand 0, single buffered']
    %11 = vsyncpa [#allocation5], 0
    %12 = vsyncpa [#allocation8], 0
    %13 = vsyncpa [#allocation6], 0
    // Predicated region
    $region2: #{tpu_custom_call.1} parent=1 // pred_check
      _
    $region3: #{tpu_custom_call.1} parent=1 // pred_check_branch
      %15 = sbr.rel (0) target = $region5
    $region4: #{tpu_custom_call.1} parent=1 // pred_region
      %s17 = ssub.s32 256, 256
      %18 = vsyncadd [#allocation5], %s17
      %s19 = sshll.u32 [#allocation4], 4
      %s20 = int_to_ptr.vmem [resolvable:$true] %s19
      %25 = dma.hbm_to_vmem [thread:$0]  %s0, 256, %s20, [#allocation5], 32, 32, 2
    $region5: #{tpu_custom_call.1} parent=1 // pred_fallthru
      _
    // Predicated region
    $region6: #{tpu_custom_call.1} parent=1 // pred_check
      _
    $region7: #{tpu_custom_call.1} parent=1 // pred_check_branch
      %27 = sbr.rel (0) target = $region9
    $region8: #{tpu_custom_call.1} parent=1 // pred_region
      %s29 = ssub.s32 256, 256
      %30 = vsyncadd [#allocation8], %s29
      %s31 = sshll.u32 [#allocation7], 4
      %s32 = int_to_ptr.vmem [resolvable:$true] %s31
      %37 = dma.hbm_to_vmem [thread:$0]  %s1, 256, %s32, [#allocation8], 128, 128, 8
    $region9: #{tpu_custom_call.1} parent=1 // pred_fallthru
      _
    // Predicated region
    $region10: #{tpu_custom_call.1} parent=1 // pred_check
      _
    $region11: #{tpu_custom_call.1} parent=1 // pred_check_branch
      %39 = sbr.rel (0) target = $region13
    $region12: #{tpu_custom_call.1} parent=1 // pred_region
      _
    $region13: #{tpu_custom_call.1} parent=1 // pred_fallthru
      _
    // Predicated region
    $region14: #{tpu_custom_call.1} parent=1 // pred_check
      _
    $region15: #{tpu_custom_call.1} parent=1 // pred_check_branch
      %41 = sbr.rel (0) target = $region17
    $region16: #{tpu_custom_call.1} parent=1 // pred_region
      _
    $region17: #{tpu_custom_call.1} parent=1 // pred_fallthru
      _
    // Predicated region
    $region18: #{tpu_custom_call.1} parent=1 // pred_check
      _
    $region19: #{tpu_custom_call.1} parent=1 // pred_check_branch
      %43 = sbr.rel (0) target = $region21
    $region20: #{tpu_custom_call.1} parent=1 // pred_region
      _
    $region21: #{tpu_custom_call.1} parent=1 // pred_fallthru
      _
    // Predicated region
    $region22: #{tpu_custom_call.1} parent=1 // pred_check
      _
    $region23: #{tpu_custom_call.1} parent=1 // pred_check_branch
      %45 = sbr.rel (0) target = $region25
    $region24: #{tpu_custom_call.1} parent=1 // pred_region
      _
    $region25: #{tpu_custom_call.1} parent=1 // pred_fallthru
      _
    // Predicated region
    $region26: #{tpu_custom_call.1} parent=1 // pred_check
      _
    $region27: #{tpu_custom_call.1} parent=1 // pred_check_branch
      %47 = sbr.rel (0) target = $region29
    $region28: #{tpu_custom_call.1} parent=1 // pred_region
      %48 = dma.done [#allocation5], 256
    $region29: #{tpu_custom_call.1} parent=1 // pred_fallthru
      _
    // Predicated region
    $region30: #{tpu_custom_call.1} parent=1 // pred_check
      _
    $region31: #{tpu_custom_call.1} parent=1 // pred_check_branch
      %50 = sbr.rel (0) target = $region33
    $region32: #{tpu_custom_call.1} parent=1 // pred_region
      %51 = dma.done [#allocation8], 256
    $region33: #{tpu_custom_call.1} parent=1 // pred_fallthru
      _
    %v52 = vld [vmem:[#allocation4] sm:$0x3]
    %v53 = vld [vmem:[#allocation4 + $0x2] sm:$0x3]
    %v54 = vld [vmem:[#allocation4 + $0x4] sm:$0x3]
    %v55 = vld [vmem:[#allocation4 + $0x6] sm:$0x3]
    %v56 = vld [vmem:[#allocation4 + $0x8] sm:$0x3]
    %v57 = vld [vmem:[#allocation4 + $0xa] sm:$0x3]
    %v58 = vld [vmem:[#allocation4 + $0xc] sm:$0x3]
    %v59 = vld [vmem:[#allocation4 + $0xe] sm:$0x3]
    %v60 = vld [vmem:[#allocation7] sm:$0xff]
    %v61 = vld [vmem:[#allocation7 + $0x8] sm:$0xff]
    %v62 = vld [vmem:[%s3] sm:$0x1]
    %v64 = vlaneseq
    %v65 = vshrl.u32 %v64, 7
    %v66 = vsub.s32 0, %v65
    %v67 = vrot.slane %v62, %v66
    %v77 = vcombine.low %v52, %v53
    %v78 = vcombine.low %v54, %v55
    %v80 = vunpack.c.l.s4 1983009808
    %v81 = vunpack.c.0.s8 %v80
    %v82 = vlaneseq
    %v83 = vshrl.u32 %v82, 7
    %v84 = vsub.s32 %v81, %v83
    %v85 = vrot.slane %v77, %v84
    %v87 = vunpack.c.l.s4 1983009808
    %v88 = vunpack.c.0.s8 %v87
    %v89 = vlaneseq
    %v90 = vshrl.u32 %v89, 7
    %v91 = vsub.s32 %v88, %v90
    %v92 = vrot.slane %v78, %v91
    %v93 = vcombine.low %v85, %v92
    %v94 = vcombine.low %v56, %v57
    %v95 = vcombine.low %v58, %v59
    %v97 = vunpack.c.l.s4 1983009808
    %v98 = vunpack.c.0.s8 %v97
    %v99 = vlaneseq
    %v100 = vshrl.u32 %v99, 7
    %v101 = vsub.s32 %v98, %v100
    %v102 = vrot.slane %v94, %v101
    %v104 = vunpack.c.l.s4 1983009808
    %v105 = vunpack.c.0.s8 %v104
    %v106 = vlaneseq
    %v107 = vshrl.u32 %v106, 7
    %v108 = vsub.s32 %v105, %v107
    %v109 = vrot.slane %v95, %v108
    %v110 = vcombine.low %v102, %v109
    %vm111 = vcmask 130048
    %v112 = vsel %vm111, %v93, 0
    %v114 = vsel %vm111, %v110, 0
    %116 = vmatprep.subr.mxu0 0.0
    %117 = vmatpush1.msra.mxu0 0.0
    %118 = vmatprep.subr.mxu0 0.0
    %119 = vmatpush1.msra.mxu0 0.0
    %120 = vmatprep.subr.mxu0 0.0
    %121 = vmatpush1.msra.mxu0 0.0
    %122 = vmatprep.subr.mxu0 0.0
    %123 = vmatpush1.msra.mxu0 0.0
    %124 = vmatprep.subr.mxu0 0.0
    %125 = vmatpush1.msra.mxu0 0.0
    %126 = vmatprep.subr.mxu0 0.0
    %127 = vmatpush1.msra.mxu0 0.0
    %128 = vmatprep.subr.mxu0 0.0
    %129 = vmatpush1.msra.mxu0 0.0
    %130 = vmatprep.subr.mxu0 0.0
    %131 = vmatpush1.msra.mxu0 0.0
    %132 = vmatprep.subr.mxu0 0.0
    %133 = vmatpush1.msra.mxu0 0.0
    %134 = vmatprep.subr.mxu0 0.0
    %135 = vmatpush1.msra.mxu0 0.0
    %136 = vmatprep.subr.mxu0 0.0
    %137 = vmatpush1.msra.mxu0 0.0
    %138 = vmatprep.subr.mxu0 0.0
    %139 = vmatpush1.msra.mxu0 0.0
    %140 = vmatprep.subr.mxu0 0.0
    %141 = vmatpush1.msra.mxu0 0.0
    %142 = vmatprep.subr.mxu0 0.0
    %143 = vmatpush1.msra.mxu0 0.0
    %144 = vmatprep.subr.mxu0 0.0
    %145 = vmatpush1.msra.mxu0 %v61
    %146 = vmatprep.subr.mxu0 0.0
    %147 = vmatpush1.msra.mxu0 %v60
    %148 = vmatprep.subr.mxu0 0.0
    %149 = vmatpush2.msra.mxu0 0.0
    %150 = vmatprep.subr.mxu0 0.0
    %151 = vmatpush2.msra.mxu0 0.0
    %152 = vmatprep.subr.mxu0 0.0
    %153 = vmatpush2.msra.mxu0 0.0
    %154 = vmatprep.subr.mxu0 0.0
    %155 = vmatpush2.msra.mxu0 0.0
    %156 = vmatprep.subr.mxu0 0.0
    %157 = vmatpush2.msra.mxu0 0.0
    %158 = vmatprep.subr.mxu0 0.0
    %159 = vmatpush2.msra.mxu0 0.0
    %160 = vmatprep.subr.mxu0 0.0
    %161 = vmatpush2.msra.mxu0 0.0
    %162 = vmatprep.subr.mxu0 0.0
    %163 = vmatpush2.msra.mxu0 0.0
    %164 = vmatprep.subr.mxu0 0.0
    %165 = vmatpush2.msra.mxu0 0.0
    %166 = vmatprep.subr.mxu0 0.0
    %167 = vmatpush2.msra.mxu0 0.0
    %168 = vmatprep.subr.mxu0 0.0
    %169 = vmatpush2.msra.mxu0 0.0
    %170 = vmatprep.subr.mxu0 0.0
    %171 = vmatpush2.msra.mxu0 0.0
    %172 = vmatprep.subr.mxu0 0.0
    %173 = vmatpush2.msra.mxu0 0.0
    %174 = vmatprep.subr.mxu0 0.0
    %175 = vmatpush2.msra.mxu0 0.0
    %176 = vmatprep.subr.mxu0 0.0
    %177 = vmatpush2.msra.mxu0 0.0
    %178 = vmatprep.subr.mxu0 0.0
    %179 = vmatpush2.msra.mxu0 0.0
    %180 = vmatprep.mubr.f32.mxu0 0.0
    %181 = vmatmul.mubr.f32.gmra.mxu0 %v112
    %v182 = vpop.f32.mrf.mxu0
    %v183 = vadd.f32 %v67, %v182
    %v184 = vpop.f32.mrf.mxu0
    %185 = vmatprep.mubr.f32.mxu0 0.0
    %186 = vmatmul.mubr.f32.gmra.mxu0 %v114
    %v187 = vpop.f32.mrf.mxu0
    %v188 = vadd.f32 %v67, %v187
    %v189 = vpop.f32.mrf.mxu0
    %190 = vdwg.mxu0
    %v193 = vcombine.high %v183, %v183
    %v195 = vunpack.c.l.s4 1983009808
    %v196 = vunpack.c.0.s8 %v195
    %v197 = vlaneseq
    %v198 = vshrl.u32 %v197, 7
    %v199 = vsub.s32 %v196, %v198
    %v200 = vrot.slane %v183, %v199
    %v202 = vunpack.c.l.s4 1983009808
    %v203 = vunpack.c.0.s8 %v202
    %v204 = vlaneseq
    %v205 = vshrl.u32 %v204, 7
    %v206 = vsub.s32 %v203, %v205
    %v207 = vrot.slane %v193, %v206
    %v208 = vcombine.high %v200, %v200
    %v209 = vcombine.high %v207, %v207
    %v210 = vcombine.high %v188, %v188
    %v212 = vunpack.c.l.s4 1983009808
    %v213 = vunpack.c.0.s8 %v212
    %v214 = vlaneseq
    %v215 = vshrl.u32 %v214, 7
    %v216 = vsub.s32 %v213, %v215
    %v217 = vrot.slane %v188, %v216
    %v219 = vunpack.c.l.s4 1983009808
    %v220 = vunpack.c.0.s8 %v219
    %v221 = vlaneseq
    %v222 = vshrl.u32 %v221, 7
    %v223 = vsub.s32 %v220, %v222
    %v224 = vrot.slane %v210, %v223
    %v225 = vcombine.high %v217, %v217
    %v226 = vcombine.high %v224, %v224
    %235 = vst [vmem:[#allocation2] sm:$0x3] %v200
    %236 = vst [vmem:[#allocation2 + $0x2] sm:$0x3] %v208
    %237 = vst [vmem:[#allocation2 + $0x4] sm:$0x3] %v207
    %238 = vst [vmem:[#allocation2 + $0x6] sm:$0x3] %v209
    %239 = vst [vmem:[#allocation2 + $0x8] sm:$0x3] %v217
    %240 = vst [vmem:[#allocation2 + $0xa] sm:$0x3] %v225
    %241 = vst [vmem:[#allocation2 + $0xc] sm:$0x3] %v224
    %242 = vst [vmem:[#allocation2 + $0xe] sm:$0x3] %v226
    %v243 = vld [vmem:[%s2] sm:$0xff]
    %v244 = vld [vmem:[%s2 + $0x8] sm:$0xff]
    %v245 = vld [vmem:[%s2 + $0x10] sm:$0xff]
    %v246 = vld [vmem:[%s2 + $0x18] sm:$0xff]
    %v247 = vld [vmem:[#allocation2] sm:$0x3]
    %vm248 = vcmask 261120
    %v250 = vsel %vm248, 0.0, 0
    %252 = vmatprep.subr.mxu0 0.0
    %253 = vmatpush1.msra.mxu0 0.0
    %254 = vmatprep.subr.mxu0 0.0
    %255 = vmatpush1.msra.mxu0 0.0
    %256 = vmatprep.subr.mxu0 0.0
    %257 = vmatpush1.msra.mxu0 0.0
    %258 = vmatprep.subr.mxu0 0.0
    %259 = vmatpush1.msra.mxu0 0.0
    %260 = vmatprep.subr.mxu0 0.0
    %261 = vmatpush1.msra.mxu0 0.0
    %262 = vmatprep.subr.mxu0 0.0
    %263 = vmatpush1.msra.mxu0 0.0
    %264 = vmatprep.subr.mxu0 0.0
    %265 = vmatpush1.msra.mxu0 0.0
    %266 = vmatprep.subr.mxu0 0.0
    %267 = vmatpush1.msra.mxu0 0.0
    %268 = vmatprep.subr.mxu0 0.0
    %269 = vmatpush1.msra.mxu0 0.0
    %270 = vmatprep.subr.mxu0 0.0
    %271 = vmatpush1.msra.mxu0 0.0
    %272 = vmatprep.subr.mxu0 0.0
    %273 = vmatpush1.msra.mxu0 0.0
    %274 = vmatprep.subr.mxu0 0.0
    %275 = vmatpush1.msra.mxu0 0.0
    %276 = vmatprep.subr.mxu0 0.0
    %277 = vmatpush1.msra.mxu0 %v246
    %278 = vmatprep.subr.mxu0 0.0
    %279 = vmatpush1.msra.mxu0 %v245
    %280 = vmatprep.subr.mxu0 0.0
    %281 = vmatpush1.msra.mxu0 %v244
    %282 = vmatprep.subr.mxu0 0.0
    %283 = vmatpush1.msra.mxu0 %v243
    %284 = vmatprep.subr.mxu0 0.0
    %285 = vmatpush2.msra.mxu0 0.0
    %286 = vmatprep.subr.mxu0 0.0
    %287 = vmatpush2.msra.mxu0 0.0
    %288 = vmatprep.subr.mxu0 0.0
    %289 = vmatpush2.msra.mxu0 0.0
    %290 = vmatprep.subr.mxu0 0.0
    %291 = vmatpush2.msra.mxu0 0.0
    %292 = vmatprep.subr.mxu0 0.0
    %293 = vmatpush2.msra.mxu0 0.0
    %294 = vmatprep.subr.mxu0 0.0
    %295 = vmatpush2.msra.mxu0 0.0
    %296 = vmatprep.subr.mxu0 0.0
    %297 = vmatpush2.msra.mxu0 0.0
    %298 = vmatprep.subr.mxu0 0.0
    %299 = vmatpush2.msra.mxu0 0.0
    %300 = vmatprep.subr.mxu0 0.0
    %301 = vmatpush2.msra.mxu0 0.0
    %302 = vmatprep.subr.mxu0 0.0
    %303 = vmatpush2.msra.mxu0 0.0
    %304 = vmatprep.subr.mxu0 0.0
    %305 = vmatpush2.msra.mxu0 0.0
    %306 = vmatprep.subr.mxu0 0.0
    %307 = vmatpush2.msra.mxu0 0.0
    %308 = vmatprep.subr.mxu0 0.0
    %309 = vmatpush2.msra.mxu0 0.0
    %310 = vmatprep.subr.mxu0 0.0
    %311 = vmatpush2.msra.mxu0 0.0
    %312 = vmatprep.subr.mxu0 0.0
    %313 = vmatpush2.msra.mxu0 0.0
    %314 = vmatprep.subr.mxu0 0.0
    %315 = vmatpush2.msra.mxu0 0.0
    %316 = vmatprep.mubr.f32.mxu0 0.0
    %317 = vmatmul.mubr.f32.gmra.mxu0 %v250
    %v318 = vpop.f32.mrf.mxu0
    %v319 = vadd.f32 0.0, %v318
    %v320 = vpop.f32.mrf.mxu0
    %321 = vdwg.mxu0
    %v322 = vadd.f32 %v247, %v319
    %v323 = vxor.u32 %v322, 2147483648
    %v324 = vmul.f32 %v323, 1.442695
    %v325 = vpow.pop %v324
    %v326 = vadd.f32 %v325, 1.0
    %v327 = vrcp.pop %v326
    %v328 = vmul.f32 1.0, %v327
    %v329 = vtanh.pop %v322
    %v330 = vmul.f32 %v328, 0.0
    %332 = vrot.lane.b32.xlu0 %v329, 64
    %v333 = vpop.permute.xlu0 %332
    %v335 = vmul.f32 %v328, %v333
    %337 = vrot.lane.b32.xlu0 %v335, 32
    %v338 = vpop.permute.xlu0 %337
    %v340 = vadd.f32 %v330, %v338
    %v341 = vtanh.pop %v340
    %343 = vrot.lane.b32.xlu0 %v341, 64
    %v344 = vpop.permute.xlu0 %343
    %v346 = vmul.f32 %v328, %v344
    %348 = vrot.lane.b32.xlu0 %v346, 32
    %v349 = vpop.permute.xlu0 %348
    %vm351 = vcmask 254976
    %352 = vst.msk [vmem:[#allocation3] sm:$0x3] %vm351, %v349
    %s353 = scalar_lea.vmem [#allocation2], 2
    %v354 = vld [vmem:[%s353] sm:$0x3]
    %v355 = vsel %vm248, %v349, 0
    %357 = vmatprep.subr.mxu0 0.0
    %358 = vmatpush1.msra.mxu0 0.0
    %359 = vmatprep.subr.mxu0 0.0
    %360 = vmatpush1.msra.mxu0 0.0
    %361 = vmatprep.subr.mxu0 0.0
    %362 = vmatpush1.msra.mxu0 0.0
    %363 = vmatprep.subr.mxu0 0.0
    %364 = vmatpush1.msra.mxu0 0.0
    %365 = vmatprep.subr.mxu0 0.0
    %366 = vmatpush1.msra.mxu0 0.0
    %367 = vmatprep.subr.mxu0 0.0
    %368 = vmatpush1.msra.mxu0 0.0
    %369 = vmatprep.subr.mxu0 0.0
    %370 = vmatpush1.msra.mxu0 0.0
    %371 = vmatprep.subr.mxu0 0.0
    %372 = vmatpush1.msra.mxu0 0.0
    %373 = vmatprep.subr.mxu0 0.0
    %374 = vmatpush1.msra.mxu0 0.0
    %375 = vmatprep.subr.mxu0 0.0
    %376 = vmatpush1.msra.mxu0 0.0
    %377 = vmatprep.subr.mxu0 0.0
    %378 = vmatpush1.msra.mxu0 0.0
    %379 = vmatprep.subr.mxu0 0.0
    %380 = vmatpush1.msra.mxu0 0.0
    %381 = vmatprep.subr.mxu0 0.0
    %382 = vmatpush1.msra.mxu0 %v246
    %383 = vmatprep.subr.mxu0 0.0
    %384 = vmatpush1.msra.mxu0 %v245
    %385 = vmatprep.subr.mxu0 0.0
    %386 = vmatpush1.msra.mxu0 %v244
    %387 = vmatprep.subr.mxu0 0.0
    %388 = vmatpush1.msra.mxu0 %v243
    %389 = vmatprep.subr.mxu0 0.0
    %390 = vmatpush2.msra.mxu0 0.0
    %391 = vmatprep.subr.mxu0 0.0
    %392 = vmatpush2.msra.mxu0 0.0
    %393 = vmatprep.subr.mxu0 0.0
    %394 = vmatpush2.msra.mxu0 0.0
    %395 = vmatprep.subr.mxu0 0.0
    %396 = vmatpush2.msra.mxu0 0.0
    %397 = vmatprep.subr.mxu0 0.0
    %398 = vmatpush2.msra.mxu0 0.0
    %399 = vmatprep.subr.mxu0 0.0
    %400 = vmatpush2.msra.mxu0 0.0
    %401 = vmatprep.subr.mxu0 0.0
    %402 = vmatpush2.msra.mxu0 0.0
    %403 = vmatprep.subr.mxu0 0.0
    %404 = vmatpush2.msra.mxu0 0.0
    %405 = vmatprep.subr.mxu0 0.0
    %406 = vmatpush2.msra.mxu0 0.0
    %407 = vmatprep.subr.mxu0 0.0
    %408 = vmatpush2.msra.mxu0 0.0
    %409 = vmatprep.subr.mxu0 0.0
    %410 = vmatpush2.msra.mxu0 0.0
    %411 = vmatprep.subr.mxu0 0.0
    %412 = vmatpush2.msra.mxu0 0.0
    %413 = vmatprep.subr.mxu0 0.0
    %414 = vmatpush2.msra.mxu0 0.0
    %415 = vmatprep.subr.mxu0 0.0
    %416 = vmatpush2.msra.mxu0 0.0
    %417 = vmatprep.subr.mxu0 0.0
    %418 = vmatpush2.msra.mxu0 0.0
    %419 = vmatprep.subr.mxu0 0.0
    %420 = vmatpush2.msra.mxu0 0.0
    %421 = vmatprep.mubr.f32.mxu0 0.0
    %422 = vmatmul.mubr.f32.gmra.mxu0 %v355
    %v423 = vpop.f32.mrf.mxu0
    %v424 = vadd.f32 0.0, %v423
    %v425 = vpop.f32.mrf.mxu0
    %426 = vdwg.mxu0
    %v427 = vadd.f32 %v354, %v424
    %v428 = vxor.u32 %v427, 2147483648
    %v429 = vmul.f32 %v428, 1.442695
    %v430 = vpow.pop %v429
    %v431 = vadd.f32 %v430, 1.0
    %v432 = vrcp.pop %v431
    %v433 = vmul.f32 1.0, %v432
    %v434 = vtanh.pop %v427
    %v435 = vmul.f32 %v433, %v340
    %437 = vrot.lane.b32.xlu0 %v434, 64
    %v438 = vpop.permute.xlu0 %437
    %v440 = vmul.f32 %v433, %v438
    %442 = vrot.lane.b32.xlu0 %v440, 32
    %v443 = vpop.permute.xlu0 %442
    %v445 = vadd.f32 %v435, %v443
    %v446 = vtanh.pop %v445
    %448 = vrot.lane.b32.xlu0 %v446, 64
    %v449 = vpop.permute.xlu0 %448
    %v451 = vmul.f32 %v433, %v449
    %453 = vrot.lane.b32.xlu0 %v451, 32
    %v454 = vpop.permute.xlu0 %453
    %s456 = scalar_lea.vmem [#allocation3], 2
    %457 = vst.msk [vmem:[%s456] sm:$0x3] %vm351, %v454
    %s458 = scalar_lea.vmem [#allocation2], 4
    %v459 = vld [vmem:[%s458] sm:$0x3]
    %v460 = vsel %vm248, %v454, 0
    %462 = vmatprep.subr.mxu0 0.0
    %463 = vmatpush1.msra.mxu0 0.0
    %464 = vmatprep.subr.mxu0 0.0
    %465 = vmatpush1.msra.mxu0 0.0
    %466 = vmatprep.subr.mxu0 0.0
    %467 = vmatpush1.msra.mxu0 0.0
    %468 = vmatprep.subr.mxu0 0.0
    %469 = vmatpush1.msra.mxu0 0.0
    %470 = vmatprep.subr.mxu0 0.0
    %471 = vmatpush1.msra.mxu0 0.0
    %472 = vmatprep.subr.mxu0 0.0
    %473 = vmatpush1.msra.mxu0 0.0
    %474 = vmatprep.subr.mxu0 0.0
    %475 = vmatpush1.msra.mxu0 0.0
    %476 = vmatprep.subr.mxu0 0.0
    %477 = vmatpush1.msra.mxu0 0.0
    %478 = vmatprep.subr.mxu0 0.0
    %479 = vmatpush1.msra.mxu0 0.0
    %480 = vmatprep.subr.mxu0 0.0
    %481 = vmatpush1.msra.mxu0 0.0
    %482 = vmatprep.subr.mxu0 0.0
    %483 = vmatpush1.msra.mxu0 0.0
    %484 = vmatprep.subr.mxu0 0.0
    %485 = vmatpush1.msra.mxu0 0.0
    %486 = vmatprep.subr.mxu0 0.0
    %487 = vmatpush1.msra.mxu0 %v246
    %488 = vmatprep.subr.mxu0 0.0
    %489 = vmatpush1.msra.mxu0 %v245
    %490 = vmatprep.subr.mxu0 0.0
    %491 = vmatpush1.msra.mxu0 %v244
    %492 = vmatprep.subr.mxu0 0.0
    %493 = vmatpush1.msra.mxu0 %v243
    %494 = vmatprep.subr.mxu0 0.0
    %495 = vmatpush2.msra.mxu0 0.0
    %496 = vmatprep.subr.mxu0 0.0
    %497 = vmatpush2.msra.mxu0 0.0
    %498 = vmatprep.subr.mxu0 0.0
    %499 = vmatpush2.msra.mxu0 0.0
    %500 = vmatprep.subr.mxu0 0.0
    %501 = vmatpush2.msra.mxu0 0.0
    %502 = vmatprep.subr.mxu0 0.0
    %503 = vmatpush2.msra.mxu0 0.0
    %504 = vmatprep.subr.mxu0 0.0
    %505 = vmatpush2.msra.mxu0 0.0
    %506 = vmatprep.subr.mxu0 0.0
    %507 = vmatpush2.msra.mxu0 0.0
    %508 = vmatprep.subr.mxu0 0.0
    %509 = vmatpush2.msra.mxu0 0.0
    %510 = vmatprep.subr.mxu0 0.0
    %511 = vmatpush2.msra.mxu0 0.0
    %512 = vmatprep.subr.mxu0 0.0
    %513 = vmatpush2.msra.mxu0 0.0
    %514 = vmatprep.subr.mxu0 0.0
    %515 = vmatpush2.msra.mxu0 0.0
    %516 = vmatprep.subr.mxu0 0.0
    %517 = vmatpush2.msra.mxu0 0.0
    %518 = vmatprep.subr.mxu0 0.0
    %519 = vmatpush2.msra.mxu0 0.0
    %520 = vmatprep.subr.mxu0 0.0
    %521 = vmatpush2.msra.mxu0 0.0
    %522 = vmatprep.subr.mxu0 0.0
    %523 = vmatpush2.msra.mxu0 0.0
    %524 = vmatprep.subr.mxu0 0.0
    %525 = vmatpush2.msra.mxu0 0.0
    %526 = vmatprep.mubr.f32.mxu0 0.0
    %527 = vmatmul.mubr.f32.gmra.mxu0 %v460
    %v528 = vpop.f32.mrf.mxu0
    %v529 = vadd.f32 0.0, %v528
    %v530 = vpop.f32.mrf.mxu0
    %531 = vdwg.mxu0
    %v532 = vadd.f32 %v459, %v529
    %v533 = vxor.u32 %v532, 2147483648
    %v534 = vmul.f32 %v533, 1.442695
    %v535 = vpow.pop %v534
    %v536 = vadd.f32 %v535, 1.0
    %v537 = vrcp.pop %v536
    %v538 = vmul.f32 1.0, %v537
    %v539 = vtanh.pop %v532
    %v540 = vmul.f32 %v538, %v445
    %542 = vrot.lane.b32.xlu0 %v539, 64
    %v543 = vpop.permute.xlu0 %542
    %v545 = vmul.f32 %v538, %v543
    %547 = vrot.lane.b32.xlu0 %v545, 32
    %v548 = vpop.permute.xlu0 %547
    %v550 = vadd.f32 %v540, %v548
    %v551 = vtanh.pop %v550
    %553 = vrot.lane.b32.xlu0 %v551, 64
    %v554 = vpop.permute.xlu0 %553
    %v556 = vmul.f32 %v538, %v554
    %558 = vrot.lane.b32.xlu0 %v556, 32
    %v559 = vpop.permute.xlu0 %558
    %s561 = scalar_lea.vmem [#allocation3], 4
    %562 = vst.msk [vmem:[%s561] sm:$0x3] %vm351, %v559
    %s563 = scalar_lea.vmem [#allocation2], 6
    %v564 = vld [vmem:[%s563] sm:$0x3]
    %v565 = vsel %vm248, %v559, 0
    %567 = vmatprep.subr.mxu0 0.0
    %568 = vmatpush1.msra.mxu0 0.0
    %569 = vmatprep.subr.mxu0 0.0
    %570 = vmatpush1.msra.mxu0 0.0
    %571 = vmatprep.subr.mxu0 0.0
    %572 = vmatpush1.msra.mxu0 0.0
    %573 = vmatprep.subr.mxu0 0.0
    %574 = vmatpush1.msra.mxu0 0.0
    %575 = vmatprep.subr.mxu0 0.0
    %576 = vmatpush1.msra.mxu0 0.0
    %577 = vmatprep.subr.mxu0 0.0
    %578 = vmatpush1.msra.mxu0 0.0
    %579 = vmatprep.subr.mxu0 0.0
    %580 = vmatpush1.msra.mxu0 0.0
    %581 = vmatprep.subr.mxu0 0.0
    %582 = vmatpush1.msra.mxu0 0.0
    %583 = vmatprep.subr.mxu0 0.0
    %584 = vmatpush1.msra.mxu0 0.0
    %585 = vmatprep.subr.mxu0 0.0
    %586 = vmatpush1.msra.mxu0 0.0
    %587 = vmatprep.subr.mxu0 0.0
    %588 = vmatpush1.msra.mxu0 0.0
    %589 = vmatprep.subr.mxu0 0.0
    %590 = vmatpush1.msra.mxu0 0.0
    %591 = vmatprep.subr.mxu0 0.0
    %592 = vmatpush1.msra.mxu0 %v246
    %593 = vmatprep.subr.mxu0 0.0
    %594 = vmatpush1.msra.mxu0 %v245
    %595 = vmatprep.subr.mxu0 0.0
    %596 = vmatpush1.msra.mxu0 %v244
    %597 = vmatprep.subr.mxu0 0.0
    %598 = vmatpush1.msra.mxu0 %v243
    %599 = vmatprep.subr.mxu0 0.0
    %600 = vmatpush2.msra.mxu0 0.0
    %601 = vmatprep.subr.mxu0 0.0
    %602 = vmatpush2.msra.mxu0 0.0
    %603 = vmatprep.subr.mxu0 0.0
    %604 = vmatpush2.msra.mxu0 0.0
    %605 = vmatprep.subr.mxu0 0.0
    %606 = vmatpush2.msra.mxu0 0.0
    %607 = vmatprep.subr.mxu0 0.0
    %608 = vmatpush2.msra.mxu0 0.0
    %609 = vmatprep.subr.mxu0 0.0
    %610 = vmatpush2.msra.mxu0 0.0
    %611 = vmatprep.subr.mxu0 0.0
    %612 = vmatpush2.msra.mxu0 0.0
    %613 = vmatprep.subr.mxu0 0.0
    %614 = vmatpush2.msra.mxu0 0.0
    %615 = vmatprep.subr.mxu0 0.0
    %616 = vmatpush2.msra.mxu0 0.0
    %617 = vmatprep.subr.mxu0 0.0
    %618 = vmatpush2.msra.mxu0 0.0
    %619 = vmatprep.subr.mxu0 0.0
    %620 = vmatpush2.msra.mxu0 0.0
    %621 = vmatprep.subr.mxu0 0.0
    %622 = vmatpush2.msra.mxu0 0.0
    %623 = vmatprep.subr.mxu0 0.0
    %624 = vmatpush2.msra.mxu0 0.0
    %625 = vmatprep.subr.mxu0 0.0
    %626 = vmatpush2.msra.mxu0 0.0
    %627 = vmatprep.subr.mxu0 0.0
    %628 = vmatpush2.msra.mxu0 0.0
    %629 = vmatprep.subr.mxu0 0.0
    %630 = vmatpush2.msra.mxu0 0.0
    %631 = vmatprep.mubr.f32.mxu0 0.0
    %632 = vmatmul.mubr.f32.gmra.mxu0 %v565
    %v633 = vpop.f32.mrf.mxu0
    %v634 = vadd.f32 0.0, %v633
    %v635 = vpop.f32.mrf.mxu0
    %636 = vdwg.mxu0
    %v637 = vadd.f32 %v564, %v634
    %v638 = vxor.u32 %v637, 2147483648
    %v639 = vmul.f32 %v638, 1.442695
    %v640 = vpow.pop %v639
    %v641 = vadd.f32 %v640, 1.0
    %v642 = vrcp.pop %v641
    %v643 = vmul.f32 1.0, %v642
    %v644 = vtanh.pop %v637
    %v645 = vmul.f32 %v643, %v550
    %647 = vrot.lane.b32.xlu0 %v644, 64
    %v648 = vpop.permute.xlu0 %647
    %v650 = vmul.f32 %v643, %v648
    %652 = vrot.lane.b32.xlu0 %v650, 32
    %v653 = vpop.permute.xlu0 %652
    %v655 = vadd.f32 %v645, %v653
    %v656 = vtanh.pop %v655
    %658 = vrot.lane.b32.xlu0 %v656, 64
    %v659 = vpop.permute.xlu0 %658
    %v661 = vmul.f32 %v643, %v659
    %663 = vrot.lane.b32.xlu0 %v661, 32
    %v664 = vpop.permute.xlu0 %663
    %s666 = scalar_lea.vmem [#allocation3], 6
    %667 = vst.msk [vmem:[%s666] sm:$0x3] %vm351, %v664
    %s668 = scalar_lea.vmem [#allocation2], 8
    %v669 = vld [vmem:[%s668] sm:$0x3]
    %v670 = vsel %vm248, %v664, 0
    %672 = vmatprep.subr.mxu0 0.0
    %673 = vmatpush1.msra.mxu0 0.0
    %674 = vmatprep.subr.mxu0 0.0
    %675 = vmatpush1.msra.mxu0 0.0
    %676 = vmatprep.subr.mxu0 0.0
    %677 = vmatpush1.msra.mxu0 0.0
    %678 = vmatprep.subr.mxu0 0.0
    %679 = vmatpush1.msra.mxu0 0.0
    %680 = vmatprep.subr.mxu0 0.0
    %681 = vmatpush1.msra.mxu0 0.0
    %682 = vmatprep.subr.mxu0 0.0
    %683 = vmatpush1.msra.mxu0 0.0
    %684 = vmatprep.subr.mxu0 0.0
    %685 = vmatpush1.msra.mxu0 0.0
    %686 = vmatprep.subr.mxu0 0.0
    %687 = vmatpush1.msra.mxu0 0.0
    %688 = vmatprep.subr.mxu0 0.0
    %689 = vmatpush1.msra.mxu0 0.0
    %690 = vmatprep.subr.mxu0 0.0
    %691 = vmatpush1.msra.mxu0 0.0
    %692 = vmatprep.subr.mxu0 0.0
    %693 = vmatpush1.msra.mxu0 0.0
    %694 = vmatprep.subr.mxu0 0.0
    %695 = vmatpush1.msra.mxu0 0.0
    %696 = vmatprep.subr.mxu0 0.0
    %697 = vmatpush1.msra.mxu0 %v246
    %698 = vmatprep.subr.mxu0 0.0
    %699 = vmatpush1.msra.mxu0 %v245
    %700 = vmatprep.subr.mxu0 0.0
    %701 = vmatpush1.msra.mxu0 %v244
    %702 = vmatprep.subr.mxu0 0.0
    %703 = vmatpush1.msra.mxu0 %v243
    %704 = vmatprep.subr.mxu0 0.0
    %705 = vmatpush2.msra.mxu0 0.0
    %706 = vmatprep.subr.mxu0 0.0
    %707 = vmatpush2.msra.mxu0 0.0
    %708 = vmatprep.subr.mxu0 0.0
    %709 = vmatpush2.msra.mxu0 0.0
    %710 = vmatprep.subr.mxu0 0.0
    %711 = vmatpush2.msra.mxu0 0.0
    %712 = vmatprep.subr.mxu0 0.0
    %713 = vmatpush2.msra.mxu0 0.0
    %714 = vmatprep.subr.mxu0 0.0
    %715 = vmatpush2.msra.mxu0 0.0
    %716 = vmatprep.subr.mxu0 0.0
    %717 = vmatpush2.msra.mxu0 0.0
    %718 = vmatprep.subr.mxu0 0.0
    %719 = vmatpush2.msra.mxu0 0.0
    %720 = vmatprep.subr.mxu0 0.0
    %721 = vmatpush2.msra.mxu0 0.0
    %722 = vmatprep.subr.mxu0 0.0
    %723 = vmatpush2.msra.mxu0 0.0
    %724 = vmatprep.subr.mxu0 0.0
    %725 = vmatpush2.msra.mxu0 0.0
    %726 = vmatprep.subr.mxu0 0.0
    %727 = vmatpush2.msra.mxu0 0.0
    %728 = vmatprep.subr.mxu0 0.0
    %729 = vmatpush2.msra.mxu0 0.0
    %730 = vmatprep.subr.mxu0 0.0
    %731 = vmatpush2.msra.mxu0 0.0
    %732 = vmatprep.subr.mxu0 0.0
    %733 = vmatpush2.msra.mxu0 0.0
    %734 = vmatprep.subr.mxu0 0.0
    %735 = vmatpush2.msra.mxu0 0.0
    %736 = vmatprep.mubr.f32.mxu0 0.0
    %737 = vmatmul.mubr.f32.gmra.mxu0 %v670
    %v738 = vpop.f32.mrf.mxu0
    %v739 = vadd.f32 0.0, %v738
    %v740 = vpop.f32.mrf.mxu0
    %741 = vdwg.mxu0
    %v742 = vadd.f32 %v669, %v739
    %v743 = vxor.u32 %v742, 2147483648
    %v744 = vmul.f32 %v743, 1.442695
    %v745 = vpow.pop %v744
    %v746 = vadd.f32 %v745, 1.0
    %v747 = vrcp.pop %v746
    %v748 = vmul.f32 1.0, %v747
    %v749 = vtanh.pop %v742
    %v750 = vmul.f32 %v748, %v655
    %752 = vrot.lane.b32.xlu0 %v749, 64
    %v753 = vpop.permute.xlu0 %752
    %v755 = vmul.f32 %v748, %v753
    %757 = vrot.lane.b32.xlu0 %v755, 32
    %v758 = vpop.permute.xlu0 %757
    %v760 = vadd.f32 %v750, %v758
    %v761 = vtanh.pop %v760
    %763 = vrot.lane.b32.xlu0 %v761, 64
    %v764 = vpop.permute.xlu0 %763
    %v766 = vmul.f32 %v748, %v764
    %768 = vrot.lane.b32.xlu0 %v766, 32
    %v769 = vpop.permute.xlu0 %768
    %s771 = scalar_lea.vmem [#allocation3], 8
    %772 = vst.msk [vmem:[%s771] sm:$0x3] %vm351, %v769
    %s773 = scalar_lea.vmem [#allocation2], 10
    %v774 = vld [vmem:[%s773] sm:$0x3]
    %v775 = vsel %vm248, %v769, 0
    %777 = vmatprep.subr.mxu0 0.0
    %778 = vmatpush1.msra.mxu0 0.0
    %779 = vmatprep.subr.mxu0 0.0
    %780 = vmatpush1.msra.mxu0 0.0
    %781 = vmatprep.subr.mxu0 0.0
    %782 = vmatpush1.msra.mxu0 0.0
    %783 = vmatprep.subr.mxu0 0.0
    %784 = vmatpush1.msra.mxu0 0.0
    %785 = vmatprep.subr.mxu0 0.0
    %786 = vmatpush1.msra.mxu0 0.0
    %787 = vmatprep.subr.mxu0 0.0
    %788 = vmatpush1.msra.mxu0 0.0
    %789 = vmatprep.subr.mxu0 0.0
    %790 = vmatpush1.msra.mxu0 0.0
    %791 = vmatprep.subr.mxu0 0.0
    %792 = vmatpush1.msra.mxu0 0.0
    %793 = vmatprep.subr.mxu0 0.0
    %794 = vmatpush1.msra.mxu0 0.0
    %795 = vmatprep.subr.mxu0 0.0
    %796 = vmatpush1.msra.mxu0 0.0
    %797 = vmatprep.subr.mxu0 0.0
    %798 = vmatpush1.msra.mxu0 0.0
    %799 = vmatprep.subr.mxu0 0.0
    %800 = vmatpush1.msra.mxu0 0.0
    %801 = vmatprep.subr.mxu0 0.0
    %802 = vmatpush1.msra.mxu0 %v246
    %803 = vmatprep.subr.mxu0 0.0
    %804 = vmatpush1.msra.mxu0 %v245
    %805 = vmatprep.subr.mxu0 0.0
    %806 = vmatpush1.msra.mxu0 %v244
    %807 = vmatprep.subr.mxu0 0.0
    %808 = vmatpush1.msra.mxu0 %v243
    %809 = vmatprep.subr.mxu0 0.0
    %810 = vmatpush2.msra.mxu0 0.0
    %811 = vmatprep.subr.mxu0 0.0
    %812 = vmatpush2.msra.mxu0 0.0
    %813 = vmatprep.subr.mxu0 0.0
    %814 = vmatpush2.msra.mxu0 0.0
    %815 = vmatprep.subr.mxu0 0.0
    %816 = vmatpush2.msra.mxu0 0.0
    %817 = vmatprep.subr.mxu0 0.0
    %818 = vmatpush2.msra.mxu0 0.0
    %819 = vmatprep.subr.mxu0 0.0
    %820 = vmatpush2.msra.mxu0 0.0
    %821 = vmatprep.subr.mxu0 0.0
    %822 = vmatpush2.msra.mxu0 0.0
    %823 = vmatprep.subr.mxu0 0.0
    %824 = vmatpush2.msra.mxu0 0.0
    %825 = vmatprep.subr.mxu0 0.0
    %826 = vmatpush2.msra.mxu0 0.0
    %827 = vmatprep.subr.mxu0 0.0
    %828 = vmatpush2.msra.mxu0 0.0
    %829 = vmatprep.subr.mxu0 0.0
    %830 = vmatpush2.msra.mxu0 0.0
    %831 = vmatprep.subr.mxu0 0.0
    %832 = vmatpush2.msra.mxu0 0.0
    %833 = vmatprep.subr.mxu0 0.0
    %834 = vmatpush2.msra.mxu0 0.0
    %835 = vmatprep.subr.mxu0 0.0
    %836 = vmatpush2.msra.mxu0 0.0
    %837 = vmatprep.subr.mxu0 0.0
    %838 = vmatpush2.msra.mxu0 0.0
    %839 = vmatprep.subr.mxu0 0.0
    %840 = vmatpush2.msra.mxu0 0.0
    %841 = vmatprep.mubr.f32.mxu0 0.0
    %842 = vmatmul.mubr.f32.gmra.mxu0 %v775
    %v843 = vpop.f32.mrf.mxu0
    %v844 = vadd.f32 0.0, %v843
    %v845 = vpop.f32.mrf.mxu0
    %846 = vdwg.mxu0
    %v847 = vadd.f32 %v774, %v844
    %v848 = vxor.u32 %v847, 2147483648
    %v849 = vmul.f32 %v848, 1.442695
    %v850 = vpow.pop %v849
    %v851 = vadd.f32 %v850, 1.0
    %v852 = vrcp.pop %v851
    %v853 = vmul.f32 1.0, %v852
    %v854 = vtanh.pop %v847
    %v855 = vmul.f32 %v853, %v760
    %857 = vrot.lane.b32.xlu0 %v854, 64
    %v858 = vpop.permute.xlu0 %857
    %v860 = vmul.f32 %v853, %v858
    %862 = vrot.lane.b32.xlu0 %v860, 32
    %v863 = vpop.permute.xlu0 %862
    %v865 = vadd.f32 %v855, %v863
    %v866 = vtanh.pop %v865
    %868 = vrot.lane.b32.xlu0 %v866, 64
    %v869 = vpop.permute.xlu0 %868
    %v871 = vmul.f32 %v853, %v869
    %873 = vrot.lane.b32.xlu0 %v871, 32
    %v874 = vpop.permute.xlu0 %873
    %s876 = scalar_lea.vmem [#allocation3], 10
    %877 = vst.msk [vmem:[%s876] sm:$0x3] %vm351, %v874
    %s878 = scalar_lea.vmem [#allocation2], 12
    %v879 = vld [vmem:[%s878] sm:$0x3]
    %v880 = vsel %vm248, %v874, 0
    %882 = vmatprep.subr.mxu0 0.0
    %883 = vmatpush1.msra.mxu0 0.0
    %884 = vmatprep.subr.mxu0 0.0
    %885 = vmatpush1.msra.mxu0 0.0
    %886 = vmatprep.subr.mxu0 0.0
    %887 = vmatpush1.msra.mxu0 0.0
    %888 = vmatprep.subr.mxu0 0.0
    %889 = vmatpush1.msra.mxu0 0.0
    %890 = vmatprep.subr.mxu0 0.0
    %891 = vmatpush1.msra.mxu0 0.0
    %892 = vmatprep.subr.mxu0 0.0
    %893 = vmatpush1.msra.mxu0 0.0
    %894 = vmatprep.subr.mxu0 0.0
    %895 = vmatpush1.msra.mxu0 0.0
    %896 = vmatprep.subr.mxu0 0.0
    %897 = vmatpush1.msra.mxu0 0.0
    %898 = vmatprep.subr.mxu0 0.0
    %899 = vmatpush1.msra.mxu0 0.0
    %900 = vmatprep.subr.mxu0 0.0
    %901 = vmatpush1.msra.mxu0 0.0
    %902 = vmatprep.subr.mxu0 0.0
    %903 = vmatpush1.msra.mxu0 0.0
    %904 = vmatprep.subr.mxu0 0.0
    %905 = vmatpush1.msra.mxu0 0.0
    %906 = vmatprep.subr.mxu0 0.0
    %907 = vmatpush1.msra.mxu0 %v246
    %908 = vmatprep.subr.mxu0 0.0
    %909 = vmatpush1.msra.mxu0 %v245
    %910 = vmatprep.subr.mxu0 0.0
    %911 = vmatpush1.msra.mxu0 %v244
    %912 = vmatprep.subr.mxu0 0.0
    %913 = vmatpush1.msra.mxu0 %v243
    %914 = vmatprep.subr.mxu0 0.0
    %915 = vmatpush2.msra.mxu0 0.0
    %916 = vmatprep.subr.mxu0 0.0
    %917 = vmatpush2.msra.mxu0 0.0
    %918 = vmatprep.subr.mxu0 0.0
    %919 = vmatpush2.msra.mxu0 0.0
    %920 = vmatprep.subr.mxu0 0.0
    %921 = vmatpush2.msra.mxu0 0.0
    %922 = vmatprep.subr.mxu0 0.0
    %923 = vmatpush2.msra.mxu0 0.0
    %924 = vmatprep.subr.mxu0 0.0
    %925 = vmatpush2.msra.mxu0 0.0
    %926 = vmatprep.subr.mxu0 0.0
    %927 = vmatpush2.msra.mxu0 0.0
    %928 = vmatprep.subr.mxu0 0.0
    %929 = vmatpush2.msra.mxu0 0.0
    %930 = vmatprep.subr.mxu0 0.0
    %931 = vmatpush2.msra.mxu0 0.0
    %932 = vmatprep.subr.mxu0 0.0
    %933 = vmatpush2.msra.mxu0 0.0
    %934 = vmatprep.subr.mxu0 0.0
    %935 = vmatpush2.msra.mxu0 0.0
    %936 = vmatprep.subr.mxu0 0.0
    %937 = vmatpush2.msra.mxu0 0.0
    %938 = vmatprep.subr.mxu0 0.0
    %939 = vmatpush2.msra.mxu0 0.0
    %940 = vmatprep.subr.mxu0 0.0
    %941 = vmatpush2.msra.mxu0 0.0
    %942 = vmatprep.subr.mxu0 0.0
    %943 = vmatpush2.msra.mxu0 0.0
    %944 = vmatprep.subr.mxu0 0.0
    %945 = vmatpush2.msra.mxu0 0.0
    %946 = vmatprep.mubr.f32.mxu0 0.0
    %947 = vmatmul.mubr.f32.gmra.mxu0 %v880
    %v948 = vpop.f32.mrf.mxu0
    %v949 = vadd.f32 0.0, %v948
    %v950 = vpop.f32.mrf.mxu0
    %951 = vdwg.mxu0
    %v952 = vadd.f32 %v879, %v949
    %v953 = vxor.u32 %v952, 2147483648
    %v954 = vmul.f32 %v953, 1.442695
    %v955 = vpow.pop %v954
    %v956 = vadd.f32 %v955, 1.0
    %v957 = vrcp.pop %v956
    %v958 = vmul.f32 1.0, %v957
    %v959 = vtanh.pop %v952
    %v960 = vmul.f32 %v958, %v865
    %962 = vrot.lane.b32.xlu0 %v959, 64
    %v963 = vpop.permute.xlu0 %962
    %v965 = vmul.f32 %v958, %v963
    %967 = vrot.lane.b32.xlu0 %v965, 32
    %v968 = vpop.permute.xlu0 %967
    %v970 = vadd.f32 %v960, %v968
    %v971 = vtanh.pop %v970
    %973 = vrot.lane.b32.xlu0 %v971, 64
    %v974 = vpop.permute.xlu0 %973
    %v976 = vmul.f32 %v958, %v974
    %978 = vrot.lane.b32.xlu0 %v976, 32
    %v979 = vpop.permute.xlu0 %978
    %s981 = scalar_lea.vmem [#allocation3], 12
    %982 = vst.msk [vmem:[%s981] sm:$0x3] %vm351, %v979
    %s983 = scalar_lea.vmem [#allocation2], 14
    %v984 = vld [vmem:[%s983] sm:$0x3]
    %v985 = vsel %vm248, %v979, 0
    %987 = vmatprep.subr.mxu0 0.0
    %988 = vmatpush1.msra.mxu0 0.0
    %989 = vmatprep.subr.mxu0 0.0
    %990 = vmatpush1.msra.mxu0 0.0
    %991 = vmatprep.subr.mxu0 0.0
    %992 = vmatpush1.msra.mxu0 0.0
    %993 = vmatprep.subr.mxu0 0.0
    %994 = vmatpush1.msra.mxu0 0.0
    %995 = vmatprep.subr.mxu0 0.0
    %996 = vmatpush1.msra.mxu0 0.0
    %997 = vmatprep.subr.mxu0 0.0
    %998 = vmatpush1.msra.mxu0 0.0
    %999 = vmatprep.subr.mxu0 0.0
    %1000 = vmatpush1.msra.mxu0 0.0
    %1001 = vmatprep.subr.mxu0 0.0
    %1002 = vmatpush1.msra.mxu0 0.0
    %1003 = vmatprep.subr.mxu0 0.0
    %1004 = vmatpush1.msra.mxu0 0.0
    %1005 = vmatprep.subr.mxu0 0.0
    %1006 = vmatpush1.msra.mxu0 0.0
    %1007 = vmatprep.subr.mxu0 0.0
    %1008 = vmatpush1.msra.mxu0 0.0
    %1009 = vmatprep.subr.mxu0 0.0
    %1010 = vmatpush1.msra.mxu0 0.0
    %1011 = vmatprep.subr.mxu0 0.0
    %1012 = vmatpush1.msra.mxu0 %v246
    %1013 = vmatprep.subr.mxu0 0.0
    %1014 = vmatpush1.msra.mxu0 %v245
    %1015 = vmatprep.subr.mxu0 0.0
    %1016 = vmatpush1.msra.mxu0 %v244
    %1017 = vmatprep.subr.mxu0 0.0
    %1018 = vmatpush1.msra.mxu0 %v243
    %1019 = vmatprep.subr.mxu0 0.0
    %1020 = vmatpush2.msra.mxu0 0.0
    %1021 = vmatprep.subr.mxu0 0.0
    %1022 = vmatpush2.msra.mxu0 0.0
    %1023 = vmatprep.subr.mxu0 0.0
    %1024 = vmatpush2.msra.mxu0 0.0
    %1025 = vmatprep.subr.mxu0 0.0
    %1026 = vmatpush2.msra.mxu0 0.0
    %1027 = vmatprep.subr.mxu0 0.0
    %1028 = vmatpush2.msra.mxu0 0.0
    %1029 = vmatprep.subr.mxu0 0.0
    %1030 = vmatpush2.msra.mxu0 0.0
    %1031 = vmatprep.subr.mxu0 0.0
    %1032 = vmatpush2.msra.mxu0 0.0
    %1033 = vmatprep.subr.mxu0 0.0
    %1034 = vmatpush2.msra.mxu0 0.0
    %1035 = vmatprep.subr.mxu0 0.0
    %1036 = vmatpush2.msra.mxu0 0.0
    %1037 = vmatprep.subr.mxu0 0.0
    %1038 = vmatpush2.msra.mxu0 0.0
    %1039 = vmatprep.subr.mxu0 0.0
    %1040 = vmatpush2.msra.mxu0 0.0
    %1041 = vmatprep.subr.mxu0 0.0
    %1042 = vmatpush2.msra.mxu0 0.0
    %1043 = vmatprep.subr.mxu0 0.0
    %1044 = vmatpush2.msra.mxu0 0.0
    %1045 = vmatprep.subr.mxu0 0.0
    %1046 = vmatpush2.msra.mxu0 0.0
    %1047 = vmatprep.subr.mxu0 0.0
    %1048 = vmatpush2.msra.mxu0 0.0
    %1049 = vmatprep.subr.mxu0 0.0
    %1050 = vmatpush2.msra.mxu0 0.0
    %1051 = vmatprep.mubr.f32.mxu0 0.0
    %1052 = vmatmul.mubr.f32.gmra.mxu0 %v985
    %v1053 = vpop.f32.mrf.mxu0
    %v1054 = vadd.f32 0.0, %v1053
    %v1055 = vpop.f32.mrf.mxu0
    %1056 = vdwg.mxu0
    %v1057 = vadd.f32 %v984, %v1054
    %v1058 = vxor.u32 %v1057, 2147483648
    %v1059 = vmul.f32 %v1058, 1.442695
    %v1060 = vpow.pop %v1059
    %v1061 = vadd.f32 %v1060, 1.0
    %v1062 = vrcp.pop %v1061
    %v1063 = vmul.f32 1.0, %v1062
    %v1064 = vtanh.pop %v1057
    %v1065 = vmul.f32 %v1063, %v970
    %1067 = vrot.lane.b32.xlu0 %v1064, 64
    %v1068 = vpop.permute.xlu0 %1067
    %v1070 = vmul.f32 %v1063, %v1068
    %1072 = vrot.lane.b32.xlu0 %v1070, 32
    %v1073 = vpop.permute.xlu0 %1072
    %v1075 = vadd.f32 %v1065, %v1073
    %v1076 = vtanh.pop %v1075
    %1078 = vrot.lane.b32.xlu0 %v1076, 64
    %v1079 = vpop.permute.xlu0 %1078
    %v1081 = vmul.f32 %v1063, %v1079
    %1083 = vrot.lane.b32.xlu0 %v1081, 32
    %v1084 = vpop.permute.xlu0 %1083
    %s1086 = scalar_lea.vmem [#allocation3], 14
    %1087 = vst.msk [vmem:[%s1086] sm:$0x3] %vm351, %v1084
    %v1088 = vld [vmem:[#allocation3] sm:$0x3]
    %v1089 = vld [vmem:[#allocation3 + $0x2] sm:$0x3]
    %v1090 = vld [vmem:[#allocation3 + $0x4] sm:$0x3]
    %v1091 = vld [vmem:[#allocation3 + $0x6] sm:$0x3]
    %v1092 = vld [vmem:[#allocation3 + $0x8] sm:$0x3]
    %v1093 = vld [vmem:[#allocation3 + $0xa] sm:$0x3]
    %v1094 = vld [vmem:[#allocation3 + $0xc] sm:$0x3]
    %v1095 = vld [vmem:[#allocation3 + $0xe] sm:$0x3]
    %v1096 = vld [vmem:[%s4] sm:$0xff]
    %v1097 = vld [vmem:[%s4 + $0x8] sm:$0xff]
    %v1098 = vld [vmem:[%s4 + $0x10] sm:$0xff]
    %v1099 = vld [vmem:[%s4 + $0x18] sm:$0xff]
    %v1100 = vld [vmem:[%s5] sm:$0x1]
    %v1102 = vlaneseq
    %v1103 = vshrl.u32 %v1102, 7
    %v1104 = vsub.s32 0, %v1103
    %v1105 = vrot.slane %v1100, %v1104
    %v1115 = vcombine.low %v1088, %v1089
    %v1116 = vcombine.low %v1090, %v1091
    %v1118 = vunpack.c.l.s4 1983009808
    %v1119 = vunpack.c.0.s8 %v1118
    %v1120 = vlaneseq
    %v1121 = vshrl.u32 %v1120, 7
    %v1122 = vsub.s32 %v1119, %v1121
    %v1123 = vrot.slane %v1115, %v1122
    %v1125 = vunpack.c.l.s4 1983009808
    %v1126 = vunpack.c.0.s8 %v1125
    %v1127 = vlaneseq
    %v1128 = vshrl.u32 %v1127, 7
    %v1129 = vsub.s32 %v1126, %v1128
    %v1130 = vrot.slane %v1116, %v1129
    %v1131 = vcombine.low %v1123, %v1130
    %v1132 = vcombine.low %v1092, %v1093
    %v1133 = vcombine.low %v1094, %v1095
    %v1135 = vunpack.c.l.s4 1983009808
    %v1136 = vunpack.c.0.s8 %v1135
    %v1137 = vlaneseq
    %v1138 = vshrl.u32 %v1137, 7
    %v1139 = vsub.s32 %v1136, %v1138
    %v1140 = vrot.slane %v1132, %v1139
    %v1142 = vunpack.c.l.s4 1983009808
    %v1143 = vunpack.c.0.s8 %v1142
    %v1144 = vlaneseq
    %v1145 = vshrl.u32 %v1144, 7
    %v1146 = vsub.s32 %v1143, %v1145
    %v1147 = vrot.slane %v1133, %v1146
    %v1148 = vcombine.low %v1140, %v1147
    %v1149 = vsel %vm248, %v1131, 0
    %v1151 = vsel %vm248, %v1148, 0
    %1153 = vmatprep.subr.mxu0 0.0
    %1154 = vmatpush1.msra.mxu0 0.0
    %1155 = vmatprep.subr.mxu0 0.0
    %1156 = vmatpush1.msra.mxu0 0.0
    %1157 = vmatprep.subr.mxu0 0.0
    %1158 = vmatpush1.msra.mxu0 0.0
    %1159 = vmatprep.subr.mxu0 0.0
    %1160 = vmatpush1.msra.mxu0 0.0
    %1161 = vmatprep.subr.mxu0 0.0
    %1162 = vmatpush1.msra.mxu0 0.0
    %1163 = vmatprep.subr.mxu0 0.0
    %1164 = vmatpush1.msra.mxu0 0.0
    %1165 = vmatprep.subr.mxu0 0.0
    %1166 = vmatpush1.msra.mxu0 0.0
    %1167 = vmatprep.subr.mxu0 0.0
    %1168 = vmatpush1.msra.mxu0 0.0
    %1169 = vmatprep.subr.mxu0 0.0
    %1170 = vmatpush1.msra.mxu0 0.0
    %1171 = vmatprep.subr.mxu0 0.0
    %1172 = vmatpush1.msra.mxu0 0.0
    %1173 = vmatprep.subr.mxu0 0.0
    %1174 = vmatpush1.msra.mxu0 0.0
    %1175 = vmatprep.subr.mxu0 0.0
    %1176 = vmatpush1.msra.mxu0 0.0
    %1177 = vmatprep.subr.mxu0 0.0
    %1178 = vmatpush1.msra.mxu0 %v1099
    %1179 = vmatprep.subr.mxu0 0.0
    %1180 = vmatpush1.msra.mxu0 %v1098
    %1181 = vmatprep.subr.mxu0 0.0
    %1182 = vmatpush1.msra.mxu0 %v1097
    %1183 = vmatprep.subr.mxu0 0.0
    %1184 = vmatpush1.msra.mxu0 %v1096
    %1185 = vmatprep.subr.mxu0 0.0
    %1186 = vmatpush2.msra.mxu0 0.0
    %1187 = vmatprep.subr.mxu0 0.0
    %1188 = vmatpush2.msra.mxu0 0.0
    %1189 = vmatprep.subr.mxu0 0.0
    %1190 = vmatpush2.msra.mxu0 0.0
    %1191 = vmatprep.subr.mxu0 0.0
    %1192 = vmatpush2.msra.mxu0 0.0
    %1193 = vmatprep.subr.mxu0 0.0
    %1194 = vmatpush2.msra.mxu0 0.0
    %1195 = vmatprep.subr.mxu0 0.0
    %1196 = vmatpush2.msra.mxu0 0.0
    %1197 = vmatprep.subr.mxu0 0.0
    %1198 = vmatpush2.msra.mxu0 0.0
    %1199 = vmatprep.subr.mxu0 0.0
    %1200 = vmatpush2.msra.mxu0 0.0
    %1201 = vmatprep.subr.mxu0 0.0
    %1202 = vmatpush2.msra.mxu0 0.0
    %1203 = vmatprep.subr.mxu0 0.0
    %1204 = vmatpush2.msra.mxu0 0.0
    %1205 = vmatprep.subr.mxu0 0.0
    %1206 = vmatpush2.msra.mxu0 0.0
    %1207 = vmatprep.subr.mxu0 0.0
    %1208 = vmatpush2.msra.mxu0 0.0
    %1209 = vmatprep.subr.mxu0 0.0
    %1210 = vmatpush2.msra.mxu0 0.0
    %1211 = vmatprep.subr.mxu0 0.0
    %1212 = vmatpush2.msra.mxu0 0.0
    %1213 = vmatprep.subr.mxu0 0.0
    %1214 = vmatpush2.msra.mxu0 0.0
    %1215 = vmatprep.subr.mxu0 0.0
    %1216 = vmatpush2.msra.mxu0 0.0
    %1217 = vmatprep.mubr.f32.mxu0 0.0
    %1218 = vmatmul.mubr.f32.gmra.mxu0 %v1149
    %v1219 = vpop.f32.mrf.mxu0
    %v1220 = vadd.f32 %v1105, %v1219
    %v1221 = vpop.f32.mrf.mxu0
    %1222 = vmatprep.mubr.f32.mxu0 0.0
    %1223 = vmatmul.mubr.f32.gmra.mxu0 %v1151
    %v1224 = vpop.f32.mrf.mxu0
    %v1225 = vadd.f32 %v1105, %v1224
    %v1226 = vpop.f32.mrf.mxu0
    %1227 = vdwg.mxu0
    %vm1228 = vcmask 64512
    %v1229 = vsel %vm1228, %v1220, -inf
    %1230 = vmax.xlane.f32.xlu0 %v1229
    %v1231 = vpop.xlane.xlu0 %1230
    %v1232 = vsel %vm1228, %v1225, -inf
    %1233 = vmax.xlane.f32.xlu0 %v1232
    %v1234 = vpop.xlane.xlu0 %1233
    %v1235 = vsub.f32 %v1220, %v1231
    %v1236 = vsub.f32 %v1225, %v1234
    %v1237 = vmul.f32 %v1235, 1.442695
    %v1238 = vpow.pop %v1237
    %v1239 = vmul.f32 %v1236, 1.442695
    %v1240 = vpow.pop %v1239
    %v1241 = vsel %vm1228, %v1238, 0.0
    %1242 = vadd.xlane.f32.xlu0 %v1241
    %v1243 = vpop.xlane.xlu0 %1242
    %v1244 = vsel %vm1228, %v1240, 0.0
    %1245 = vadd.xlane.f32.xlu0 %v1244
    %v1246 = vpop.xlane.xlu0 %1245
    %v1247 = vrcp.pop %v1243
    %v1248 = vrcp.pop %v1246
    %v1249 = vmul.f32 %v1238, %v1247
    %v1250 = vmul.f32 %v1240, %v1248
    %v1253 = vcombine.high %v1249, %v1249
    %v1255 = vunpack.c.l.s4 1983009808
    %v1256 = vunpack.c.0.s8 %v1255
    %v1257 = vlaneseq
    %v1258 = vshrl.u32 %v1257, 7
    %v1259 = vsub.s32 %v1256, %v1258
    %v1260 = vrot.slane %v1249, %v1259
    %v1262 = vunpack.c.l.s4 1983009808
    %v1263 = vunpack.c.0.s8 %v1262
    %v1264 = vlaneseq
    %v1265 = vshrl.u32 %v1264, 7
    %v1266 = vsub.s32 %v1263, %v1265
    %v1267 = vrot.slane %v1253, %v1266
    %v1268 = vcombine.high %v1260, %v1260
    %v1269 = vcombine.high %v1267, %v1267
    %v1270 = vcombine.high %v1250, %v1250
    %v1272 = vunpack.c.l.s4 1983009808
    %v1273 = vunpack.c.0.s8 %v1272
    %v1274 = vlaneseq
    %v1275 = vshrl.u32 %v1274, 7
    %v1276 = vsub.s32 %v1273, %v1275
    %v1277 = vrot.slane %v1250, %v1276
    %v1279 = vunpack.c.l.s4 1983009808
    %v1280 = vunpack.c.0.s8 %v1279
    %v1281 = vlaneseq
    %v1282 = vshrl.u32 %v1281, 7
    %v1283 = vsub.s32 %v1280, %v1282
    %v1284 = vrot.slane %v1270, %v1283
    %v1285 = vcombine.high %v1277, %v1277
    %v1286 = vcombine.high %v1284, %v1284
    %vm1295 = vcmask 58368
    %1296 = vst.msk [vmem:[#allocation9] sm:$0x3] %vm1295, %v1260
    %1297 = vst.msk [vmem:[#allocation9 + $0x2] sm:$0x3] %vm1295, %v1268
    %1298 = vst.msk [vmem:[#allocation9 + $0x4] sm:$0x3] %vm1295, %v1267
    %1299 = vst.msk [vmem:[#allocation9 + $0x6] sm:$0x3] %vm1295, %v1269
    %1300 = vst.msk [vmem:[#allocation9 + $0x8] sm:$0x3] %vm1295, %v1277
    %1301 = vst.msk [vmem:[#allocation9 + $0xa] sm:$0x3] %vm1295, %v1285
    %1302 = vst.msk [vmem:[#allocation9 + $0xc] sm:$0x3] %vm1295, %v1284
    %1303 = vst.msk [vmem:[#allocation9 + $0xe] sm:$0x3] %vm1295, %v1286
    // Predicated region
    $region34: #{tpu_custom_call.1} parent=1 // pred_check
      _
    $region35: #{tpu_custom_call.1} parent=1 // pred_check_branch
      %1305 = sbr.rel (0) target = $region37
    $region36: #{tpu_custom_call.1} parent=1 // pred_region
      %s1307 = ssub.s32 256, 256
      %1308 = vsyncadd [#allocation6], %s1307
      %s1309 = sshll.u32 [#allocation9], 4
      %s1310 = int_to_ptr.vmem [resolvable:$true] %s1309
      %1315 = dma.vmem_to_hbm [thread:$0]  %s1310, 256, %s6, [#allocation6], 32, 32, 2
    $region37: #{tpu_custom_call.1} parent=1 // pred_fallthru
      _
    // Predicated region
    $region38: #{tpu_custom_call.1} parent=1 // pred_check
      _
    $region39: #{tpu_custom_call.1} parent=1 // pred_check_branch
      %1317 = sbr.rel (0) target = $region41
    $region40: #{tpu_custom_call.1} parent=1 // pred_region
      %1318 = dma.done [#allocation6], 256
    $region41: #{tpu_custom_call.1} parent=1 // pred_fallthru
      _
    %1319 = vsyncpa [#allocation5], 1
    %1320 = vsyncpa [#allocation8], 1
    %1321 = vsyncpa [#allocation6], 1

</llo_original>
